<compile_context>
chip_gen: v6e
topology: v6e:2x2x1
jax: 0.10.0
libtpu: 0.0.40
codegen_flags: <defaults>
</compile_context>

<pallas_src>
import functools

import jax
import jax.numpy as jnp
from jax import lax
from jax.experimental import pallas as pl
from jax.experimental.pallas import tpu as pltpu


# ----------------------------------------------------------------------------
# Fused kernel: whole MRA forward for one batch element, (rows, W*C) layout
# ----------------------------------------------------------------------------
def _mra_fused_kernel(x_ref, w_ref, bn_ref, o_ref, *, H, W, C, h_t, w_t, P,
                      offsets):
    # x_ref : (H, W*C)        input, channels fastest within each W chunk
    # w_ref : (n_off, w_t*C)  merged depthwise weights, one row per tap offset
    # bn_ref: (2, w_t*C)      folded BatchNorm scale (row 0) / bias (row 1)
    # o_ref : (H, W*C)        gated output (same layout as x_ref)
    NEG = jnp.finfo(jnp.float32).min
    WC = W * C

    x = x_ref[...]                                            # (H, W*C)

    # ---- 3x3 / stride-1 / pad-1 max pool (separable: W-max then H-max) ------
    negc = jnp.full((H, C), NEG, dtype=jnp.float32)
    w_p1 = jnp.concatenate([x[:, C:], negc], axis=1)          # x[., w+1]
    w_m1 = jnp.concatenate([negc, x[:, :WC - C]], axis=1)     # x[., w-1]
    t = jnp.maximum(jnp.maximum(w_p1, w_m1), x)
    negr = jnp.full((1, WC), NEG, dtype=jnp.float32)
    h_p1 = jnp.concatenate([t[1:, :], negr], axis=0)          # t[h+1, .]
    h_m1 = jnp.concatenate([negr, t[:H - 1, :]], axis=0)      # t[h-1, .]
    m = jnp.maximum(jnp.maximum(h_p1, h_m1), t)               # (H, W*C)

    # ---- BlurPool reflect pad: left/top 1, right/bottom 2 -------------------
    mW = jnp.concatenate(
        [m[:, C:2 * C], m,
         m[:, (W - 2) * C:(W - 1) * C],
         m[:, (W - 3) * C:(W - 2) * C]], axis=1)              # (H, (W+3)*C)
    mp = jnp.concatenate(
        [mW[1:2, :], mW, mW[H - 2:H - 1, :], mW[H - 3:H - 2, :]],
        axis=0)                                               # (H+3, (W+3)*C)

    # ---- 4x4 binomial / 64, stride 3 (separable; 1/64 folded into H taps) ---
    blur = (1.0, 3.0, 3.0, 1.0)
    cols = []
    for j in range(w_t):                                      # W direction
        acc = None
        for b in range(4):
            s = (3 * j + b) * C
            term = blur[b] * mp[:, s:s + C]
            acc = term if acc is None else acc + term
        cols.append(acc)
    tW = jnp.concatenate(cols, axis=1)                        # (H+3, w_t*C)
    rows = []
    for i in range(h_t):                                      # H direction
        acc = None
        for a in range(4):
            term = (blur[a] * (1.0 / 64.0)) * tW[3 * i + a:3 * i + a + 1, :]
            acc = term if acc is None else acc + term
        rows.append(acc)
    xt = jnp.concatenate(rows, axis=0)                        # (h_t, w_t*C)

    # ---- zero pad of width P = ph+1 (covers the sheared/diagonal taps) ------
    zc = jnp.zeros((h_t, P * C), dtype=jnp.float32)
    zr = jnp.zeros((P, (w_t + 2 * P) * C), dtype=jnp.float32)
    xp = jnp.concatenate(
        [zr, jnp.concatenate([zc, xt, zc], axis=1), zr],
        axis=0)                                               # (h_t+2P, (w_t+2P)*C)

    # ---- 4 directional depthwise convs: one tap per unique (dy, dx) offset --
    wv = w_ref[...]                                           # loaded once
    att = jnp.zeros((h_t, w_t * C), dtype=jnp.float32)
    for idx, (dy, dx) in enumerate(offsets):
        r0 = P + dy
        c0 = (P + dx) * C
        att = att + wv[idx:idx + 1, :] * xp[r0:r0 + h_t, c0:c0 + w_t * C]

    # ---- folded BatchNorm (eval) + sigmoid gate ------------------------------
    bnv = bn_ref[...]                                         # (2, w_t*C)
    z = att * bnv[0:1, :] + bnv[1:2, :]
    gate = 1.0 / (1.0 + jnp.exp(-z))                          # (h_t, w_t*C)

    # ---- exact nearest-3x upsample + gating multiply, one dense store -------
    gcols = []
    for j in range(w_t):                                      # W repeat -> lanes
        gj = gate[:, j * C:(j + 1) * C]
        gcols += [gj, gj, gj]
    gW = jnp.concatenate(gcols, axis=1)                       # (h_t, W*C)
    grows = []
    for i in range(h_t):                                      # H repeat -> rows
        gi = gW[i:i + 1, :]
        grows += [gi, gi, gi]
    gup = jnp.concatenate(grows, axis=0)                      # (H, W*C)

    o_ref[...] = x * gup


# ----------------------------------------------------------------------------
# Wrapper
# ----------------------------------------------------------------------------
@functools.partial(jax.jit, static_argnames=("att_kernel", "eps"))
def mra_forward(x_nchw, w_h1, w_v1, w_h2, w_v2, gamma, beta, run_mean, run_var,
                *, att_kernel, eps=1e-5):
    B, C, H, W = x_nchw.shape
    assert att_kernel % 2 == 1
    assert H == W and H % 3 == 0, (
        "MRA's shear transforms need a square map; the fused nearest upsample "
        "assumes H, W divisible by 3 (the exact ratio stride-3 BlurPool gives).")
    h_t, w_t = H // 3, W // 3
    ph = att_kernel // 2
    P = ph + 1
    k = att_kernel

    # NCHW -> lane-dense (B, H, W*C); the reshape after the transpose is a
    # free row-major merge.
    x_flat = (jnp.transpose(x_nchw, (0, 2, 3, 1))
              .astype(jnp.float32).reshape(B, H, W * C))

    # ---- merge the four depthwise convs: one weight row per unique tap ------
    # (shear transforms + convs + inverse transforms fold into diagonal taps)
    offmap = {}

    def add(dy, dx, w_c):
        key = (dy, dx)
        offmap[key] = (offmap[key] + w_c) if key in offmap else w_c

    for a in range(k):                       # H_att1: kernel (k,3), pad (ph,1)
        for b in range(3):
            add(a - ph, b - 1, w_h1[:, 0, a, b])
    for a in range(3):                       # V_att1: kernel (3,k), pad (1,ph)
        for b in range(k):
            add(a - 1, b - ph, w_v1[:, 0, a, b])
    for a in range(k):                       # H_att2 in h-sheared space
        for b in range(3):
            dy = a - ph
            add(dy, (b - 1) - dy, w_h2[:, 0, a, b])
    for a in range(3):                       # V_att2 in v-sheared space
        for b in range(k):
            dx = b - ph
            add((a - 1) - dx, dx, w_v2[:, 0, a, b])

    offsets = tuple(sorted(offmap.keys()))
    n_off = len(offsets)
    w_comb = jnp.stack([offmap[o] for o in offsets], axis=0).astype(jnp.float32)
    w_tiled = jnp.tile(w_comb, (1, w_t))                      # (n_off, w_t*C)

    scale = (gamma / jnp.sqrt(run_var + eps)).astype(jnp.float32)
    bias = (beta - run_mean * scale).astype(jnp.float32)
    bn_tiled = jnp.tile(jnp.stack([scale, bias]), (1, w_t))   # (2, w_t*C)

    out_flat = pl.pallas_call(
        functools.partial(_mra_fused_kernel, H=H, W=W, C=C, h_t=h_t, w_t=w_t,
                          P=P, offsets=offsets),
        out_shape=jax.ShapeDtypeStruct((B, H, W * C), jnp.float32),
        grid_spec=pltpu.PrefetchScalarGridSpec(
            num_scalar_prefetch=0,
            grid=(B,),
            in_specs=[
                pl.BlockSpec((None, H, W * C), lambda b: (b, 0, 0)),
                pl.BlockSpec((n_off, w_t * C), lambda b: (0, 0)),
                pl.BlockSpec((2, w_t * C), lambda b: (0, 0)),
            ],
            out_specs=pl.BlockSpec((None, H, W * C), lambda b: (b, 0, 0)),
        ),
        compiler_params=pltpu.CompilerParams(
            dimension_semantics=("parallel",)),
    )(x_flat, w_tiled, bn_tiled)

    return jnp.transpose(out_flat.reshape(B, H, W, C), (0, 3, 1, 2))


# ----------------------------------------------------------------------------
# Pure-JAX reference mirroring the PyTorch forward exactly
# ----------------------------------------------------------------------------
def mra_reference(x_nchw, w_h1, w_v1, w_h2, w_v2, gamma, beta, run_mean,
                  run_var, *, att_kernel, eps=1e-5):
    B, C, H, W = x_nchw.shape
    ph = att_kernel // 2
    hp = lax.Precision.HIGHEST

    def dwconv(x, w, pad, strides=(1, 1)):
        return lax.conv_general_dilated(
            x, w, window_strides=strides, padding=pad, feature_group_count=C,
            dimension_numbers=("NCHW", "OIHW", "NCHW"), precision=hp)

    # MaxPool2d(3, stride=1, padding=1)
    m = lax.reduce_window(x_nchw, -jnp.inf, lax.max,
                          (1, 1, 3, 3), (1, 1, 1, 1),
                          ((0, 0), (0, 0), (1, 1), (1, 1)))

    # antialiased_cnns.BlurPool(C, stride=3): reflect pad (1,2,1,2), 4x4 binomial
    mpad = jnp.pad(m, ((0, 0), (0, 0), (1, 2), (1, 2)), mode="reflect")
    a1 = jnp.array([1., 3., 3., 1.], jnp.float32)
    filt = (a1[:, None] * a1[None, :]) / 64.0
    blur_w = jnp.tile(filt[None, None], (C, 1, 1, 1))
    xt = lax.conv_general_dilated(mpad, blur_w, window_strides=(3, 3),
                                  padding="VALID", feature_group_count=C,
                                  dimension_numbers=("NCHW", "OIHW", "NCHW"),
                                  precision=hp)

    def h_transform(x):
        b, c, h, w = x.shape
        x = jnp.pad(x, ((0, 0), (0, 0), (0, 0), (0, w)))
        x = x.reshape(b, c, -1)[..., :-w]
        return x.reshape(b, c, h, 2 * w - 1)

    def inv_h_transform(x):
        b, c, h, _ = x.shape
        x = x.reshape(b, c, -1)
        x = jnp.pad(x, ((0, 0), (0, 0), (0, h)))
        return x.reshape(b, c, h, 2 * h)[..., :h]

    def v_transform(x):
        x = x.transpose(0, 1, 3, 2)
        b, c, w, h = x.shape
        x = jnp.pad(x, ((0, 0), (0, 0), (0, 0), (0, h)))
        x = x.reshape(b, c, -1)[..., :-h]
        x = x.reshape(b, c, w, 2 * h - 1)
        return x.transpose(0, 1, 3, 2)

    def inv_v_transform(x):
        x = x.transpose(0, 1, 3, 2)
        b, c, w, _ = x.shape
        x = x.reshape(b, c, -1)
        x = jnp.pad(x, ((0, 0), (0, 0), (0, w)))
        x = x.reshape(b, c, w, 2 * w)[..., :w]
        return x.transpose(0, 1, 3, 2)

    x_h1 = dwconv(xt, w_h1, ((ph, ph), (1, 1)))
    x_w1 = dwconv(xt, w_v1, ((1, 1), (ph, ph)))
    x_h2 = inv_h_transform(dwconv(h_transform(xt), w_h2, ((ph, ph), (1, 1))))
    x_w2 = inv_v_transform(dwconv(v_transform(xt), w_v2, ((1, 1), (ph, ph))))

    s = x_h1 + x_w1 + x_h2 + x_w2
    att = ((s - run_mean[None, :, None, None])
           / jnp.sqrt(run_var + eps)[None, :, None, None]
           * gamma[None, :, None, None] + beta[None, :, None, None])
    gate = jax.nn.sigmoid(att)

    ht, wt = gate.shape[2], gate.shape[3]
    hi = (jnp.arange(H) * ht) // H          # F.interpolate(mode='nearest') rule
    wi = (jnp.arange(W) * wt) // W
    gate_up = gate[:, :, hi][:, :, :, wi]
    return x_nchw[:, :C] * gate_up


if __name__ == "__main__":
    B, C, H, W = 2, 64, 12, 12
    att_kernel = 7

    key = jax.random.PRNGKey(0)
    ks = jax.random.split(key, 9)
    x = jax.random.normal(ks[0], (B, C, H, W), dtype=jnp.float32)
    w_h1 = jax.random.normal(ks[1], (C, 1, att_kernel, 3), jnp.float32) * 0.15
    w_v1 = jax.random.normal(ks[2], (C, 1, 3, att_kernel), jnp.float32) * 0.15
    w_h2 = jax.random.normal(ks[3], (C, 1, att_kernel, 3), jnp.float32) * 0.15
    w_v2 = jax.random.normal(ks[4], (C, 1, 3, att_kernel), jnp.float32) * 0.15
    gamma = 1.0 + 0.1 * jax.random.normal(ks[5], (C,), jnp.float32)
    beta = 0.1 * jax.random.normal(ks[6], (C,), jnp.float32)
    run_mean = 0.1 * jax.random.normal(ks[7], (C,), jnp.float32)
    run_var = jnp.abs(1.0 + 0.1 * jax.random.normal(ks[8], (C,), jnp.float32))

    out = mra_forward(x, w_h1, w_v1, w_h2, w_v2, gamma, beta, run_mean, run_var,
                      att_kernel=att_kernel)
    out = jax.block_until_ready(out)

    ref = mra_reference(x, w_h1, w_v1, w_h2, w_v2, gamma, beta, run_mean,
                        run_var, att_kernel=att_kernel)
    assert out.shape == (B, C, H, W)
    err = float(jnp.max(jnp.abs(out - ref)))
    assert jnp.allclose(out, ref, atol=5e-4, rtol=5e-4), f"max abs err {err}"
    print("KERNEL_OK")
</pallas_src>

<mosaic_0001>
module attributes {stable_mosaic.version = 11 : i64} {
  func.func @_mra_fused_kernel(%arg0: i32, %arg1: memref<1x12x768xf32, #tpu.memory_space<vmem>>, %arg2: memref<45x256xf32, #tpu.memory_space<vmem>>, %arg3: memref<2x256xf32, #tpu.memory_space<vmem>>, %arg4: memref<1x12x768xf32, #tpu.memory_space<vmem>>) attributes {dimension_semantics = [#tpu.dimension_semantics<parallel>], iteration_bounds = array<i64: 2>, scalar_prefetch = 0 : i64, scratch_operands = 0 : i64, tpu.core_type = #tpu.core_type<tc>, window_params = [{transform_indices = @transform_0, window_bounds = array<i64: 1, 12, 768>}, {pipeline_mode = #tpu.pipeline_mode<synchronous>, transform_indices = @transform_1, window_bounds = array<i64: 45, 256>}, {pipeline_mode = #tpu.pipeline_mode<synchronous>, transform_indices = @transform_2, window_bounds = array<i64: 2, 256>}, {transform_indices = @transform_3, window_bounds = array<i64: 1, 12, 768>}]} {
    %c0 = arith.constant 0 : index
    %c0_0 = arith.constant 0 : index
    %c0_1 = arith.constant 0 : index
    %0 = vector.load %arg1[%c0, %c0_0, %c0_1] : memref<1x12x768xf32, #tpu.memory_space<vmem>>, vector<1x12x768xf32>
    %1 = vector.shape_cast %0 : vector<1x12x768xf32> to vector<12x768xf32>
    %cst = arith.constant -3.40282347E+38 : f32
    %2 = vector.broadcast %cst : f32 to vector<12x64xf32>
    %3 = vector.extract_strided_slice %1 {offsets = [0, 64], sizes = [12, 704], strides = [1, 1]} : vector<12x768xf32> to vector<12x704xf32>
    %4 = tpu.concatenate %3, %2 in 1 : vector<12x704xf32>, vector<12x64xf32> -> vector<12x768xf32>
    %5 = vector.extract_strided_slice %1 {offsets = [0, 0], sizes = [12, 704], strides = [1, 1]} : vector<12x768xf32> to vector<12x704xf32>
    %6 = tpu.concatenate %2, %5 in 1 : vector<12x64xf32>, vector<12x704xf32> -> vector<12x768xf32>
    %7 = arith.maximumf %4, %6 : vector<12x768xf32>
    %8 = arith.maximumf %7, %1 : vector<12x768xf32>
    %cst_2 = arith.constant -3.40282347E+38 : f32
    %9 = vector.broadcast %cst_2 : f32 to vector<1x768xf32>
    %10 = vector.extract_strided_slice %8 {offsets = [1, 0], sizes = [11, 768], strides = [1, 1]} : vector<12x768xf32> to vector<11x768xf32>
    %11 = tpu.concatenate %10, %9 in 0 : vector<11x768xf32>, vector<1x768xf32> -> vector<12x768xf32>
    %12 = vector.extract_strided_slice %8 {offsets = [0, 0], sizes = [11, 768], strides = [1, 1]} : vector<12x768xf32> to vector<11x768xf32>
    %13 = tpu.concatenate %9, %12 in 0 : vector<1x768xf32>, vector<11x768xf32> -> vector<12x768xf32>
    %14 = arith.maximumf %11, %13 : vector<12x768xf32>
    %15 = arith.maximumf %14, %8 : vector<12x768xf32>
    %16 = vector.extract_strided_slice %15 {offsets = [0, 64], sizes = [12, 64], strides = [1, 1]} : vector<12x768xf32> to vector<12x64xf32>
    %17 = vector.extract_strided_slice %15 {offsets = [0, 640], sizes = [12, 64], strides = [1, 1]} : vector<12x768xf32> to vector<12x64xf32>
    %18 = vector.extract_strided_slice %15 {offsets = [0, 576], sizes = [12, 64], strides = [1, 1]} : vector<12x768xf32> to vector<12x64xf32>
    %19 = tpu.concatenate %16, %15, %17, %18 in 1 : vector<12x64xf32>, vector<12x768xf32>, vector<12x64xf32>, vector<12x64xf32> -> vector<12x960xf32>
    %20 = vector.extract_strided_slice %19 {offsets = [1, 0], sizes = [1, 960], strides = [1, 1]} : vector<12x960xf32> to vector<1x960xf32>
    %21 = vector.extract_strided_slice %19 {offsets = [10, 0], sizes = [1, 960], strides = [1, 1]} : vector<12x960xf32> to vector<1x960xf32>
    %22 = vector.extract_strided_slice %19 {offsets = [9, 0], sizes = [1, 960], strides = [1, 1]} : vector<12x960xf32> to vector<1x960xf32>
    %23 = tpu.concatenate %20, %19, %21, %22 in 0 : vector<1x960xf32>, vector<12x960xf32>, vector<1x960xf32>, vector<1x960xf32> -> vector<15x960xf32>
    %24 = vector.extract_strided_slice %23 {offsets = [0, 0], sizes = [15, 64], strides = [1, 1]} : vector<15x960xf32> to vector<15x64xf32>
    %cst_3 = arith.constant 1.000000e+00 : f32
    %25 = vector.broadcast %cst_3 : f32 to vector<15x64xf32>
    %26 = arith.mulf %25, %24 : vector<15x64xf32>
    %27 = vector.extract_strided_slice %23 {offsets = [0, 64], sizes = [15, 64], strides = [1, 1]} : vector<15x960xf32> to vector<15x64xf32>
    %cst_4 = arith.constant 3.000000e+00 : f32
    %28 = vector.broadcast %cst_4 : f32 to vector<15x64xf32>
    %29 = arith.mulf %28, %27 : vector<15x64xf32>
    %30 = arith.addf %26, %29 : vector<15x64xf32>
    %31 = vector.extract_strided_slice %23 {offsets = [0, 128], sizes = [15, 64], strides = [1, 1]} : vector<15x960xf32> to vector<15x64xf32>
    %cst_5 = arith.constant 3.000000e+00 : f32
    %32 = vector.broadcast %cst_5 : f32 to vector<15x64xf32>
    %33 = arith.mulf %32, %31 : vector<15x64xf32>
    %34 = arith.addf %30, %33 : vector<15x64xf32>
    %35 = vector.extract_strided_slice %23 {offsets = [0, 192], sizes = [15, 64], strides = [1, 1]} : vector<15x960xf32> to vector<15x64xf32>
    %cst_6 = arith.constant 1.000000e+00 : f32
    %36 = vector.broadcast %cst_6 : f32 to vector<15x64xf32>
    %37 = arith.mulf %36, %35 : vector<15x64xf32>
    %38 = arith.addf %34, %37 : vector<15x64xf32>
    %39 = vector.extract_strided_slice %23 {offsets = [0, 192], sizes = [15, 64], strides = [1, 1]} : vector<15x960xf32> to vector<15x64xf32>
    %cst_7 = arith.constant 1.000000e+00 : f32
    %40 = vector.broadcast %cst_7 : f32 to vector<15x64xf32>
    %41 = arith.mulf %40, %39 : vector<15x64xf32>
    %42 = vector.extract_strided_slice %23 {offsets = [0, 256], sizes = [15, 64], strides = [1, 1]} : vector<15x960xf32> to vector<15x64xf32>
    %cst_8 = arith.constant 3.000000e+00 : f32
    %43 = vector.broadcast %cst_8 : f32 to vector<15x64xf32>
    %44 = arith.mulf %43, %42 : vector<15x64xf32>
    %45 = arith.addf %41, %44 : vector<15x64xf32>
    %46 = vector.extract_strided_slice %23 {offsets = [0, 320], sizes = [15, 64], strides = [1, 1]} : vector<15x960xf32> to vector<15x64xf32>
    %cst_9 = arith.constant 3.000000e+00 : f32
    %47 = vector.broadcast %cst_9 : f32 to vector<15x64xf32>
    %48 = arith.mulf %47, %46 : vector<15x64xf32>
    %49 = arith.addf %45, %48 : vector<15x64xf32>
    %50 = vector.extract_strided_slice %23 {offsets = [0, 384], sizes = [15, 64], strides = [1, 1]} : vector<15x960xf32> to vector<15x64xf32>
    %cst_10 = arith.constant 1.000000e+00 : f32
    %51 = vector.broadcast %cst_10 : f32 to vector<15x64xf32>
    %52 = arith.mulf %51, %50 : vector<15x64xf32>
    %53 = arith.addf %49, %52 : vector<15x64xf32>
    %54 = vector.extract_strided_slice %23 {offsets = [0, 384], sizes = [15, 64], strides = [1, 1]} : vector<15x960xf32> to vector<15x64xf32>
    %cst_11 = arith.constant 1.000000e+00 : f32
    %55 = vector.broadcast %cst_11 : f32 to vector<15x64xf32>
    %56 = arith.mulf %55, %54 : vector<15x64xf32>
    %57 = vector.extract_strided_slice %23 {offsets = [0, 448], sizes = [15, 64], strides = [1, 1]} : vector<15x960xf32> to vector<15x64xf32>
    %cst_12 = arith.constant 3.000000e+00 : f32
    %58 = vector.broadcast %cst_12 : f32 to vector<15x64xf32>
    %59 = arith.mulf %58, %57 : vector<15x64xf32>
    %60 = arith.addf %56, %59 : vector<15x64xf32>
    %61 = vector.extract_strided_slice %23 {offsets = [0, 512], sizes = [15, 64], strides = [1, 1]} : vector<15x960xf32> to vector<15x64xf32>
    %cst_13 = arith.constant 3.000000e+00 : f32
    %62 = vector.broadcast %cst_13 : f32 to vector<15x64xf32>
    %63 = arith.mulf %62, %61 : vector<15x64xf32>
    %64 = arith.addf %60, %63 : vector<15x64xf32>
    %65 = vector.extract_strided_slice %23 {offsets = [0, 576], sizes = [15, 64], strides = [1, 1]} : vector<15x960xf32> to vector<15x64xf32>
    %cst_14 = arith.constant 1.000000e+00 : f32
    %66 = vector.broadcast %cst_14 : f32 to vector<15x64xf32>
    %67 = arith.mulf %66, %65 : vector<15x64xf32>
    %68 = arith.addf %64, %67 : vector<15x64xf32>
    %69 = vector.extract_strided_slice %23 {offsets = [0, 576], sizes = [15, 64], strides = [1, 1]} : vector<15x960xf32> to vector<15x64xf32>
    %cst_15 = arith.constant 1.000000e+00 : f32
    %70 = vector.broadcast %cst_15 : f32 to vector<15x64xf32>
    %71 = arith.mulf %70, %69 : vector<15x64xf32>
    %72 = vector.extract_strided_slice %23 {offsets = [0, 640], sizes = [15, 64], strides = [1, 1]} : vector<15x960xf32> to vector<15x64xf32>
    %cst_16 = arith.constant 3.000000e+00 : f32
    %73 = vector.broadcast %cst_16 : f32 to vector<15x64xf32>
    %74 = arith.mulf %73, %72 : vector<15x64xf32>
    %75 = arith.addf %71, %74 : vector<15x64xf32>
    %76 = vector.extract_strided_slice %23 {offsets = [0, 704], sizes = [15, 64], strides = [1, 1]} : vector<15x960xf32> to vector<15x64xf32>
    %cst_17 = arith.constant 3.000000e+00 : f32
    %77 = vector.broadcast %cst_17 : f32 to vector<15x64xf32>
    %78 = arith.mulf %77, %76 : vector<15x64xf32>
    %79 = arith.addf %75, %78 : vector<15x64xf32>
    %80 = vector.extract_strided_slice %23 {offsets = [0, 768], sizes = [15, 64], strides = [1, 1]} : vector<15x960xf32> to vector<15x64xf32>
    %cst_18 = arith.constant 1.000000e+00 : f32
    %81 = vector.broadcast %cst_18 : f32 to vector<15x64xf32>
    %82 = arith.mulf %81, %80 : vector<15x64xf32>
    %83 = arith.addf %79, %82 : vector<15x64xf32>
    %84 = tpu.concatenate %38, %53, %68, %83 in 1 : vector<15x64xf32>, vector<15x64xf32>, vector<15x64xf32>, vector<15x64xf32> -> vector<15x256xf32>
    %85 = vector.extract_strided_slice %84 {offsets = [0, 0], sizes = [1, 256], strides = [1, 1]} : vector<15x256xf32> to vector<1x256xf32>
    %cst_19 = arith.constant 1.562500e-02 : f32
    %86 = vector.broadcast %cst_19 : f32 to vector<1x256xf32>
    %87 = arith.mulf %86, %85 : vector<1x256xf32>
    %88 = vector.extract_strided_slice %84 {offsets = [1, 0], sizes = [1, 256], strides = [1, 1]} : vector<15x256xf32> to vector<1x256xf32>
    %cst_20 = arith.constant 4.687500e-02 : f32
    %89 = vector.broadcast %cst_20 : f32 to vector<1x256xf32>
    %90 = arith.mulf %89, %88 : vector<1x256xf32>
    %91 = arith.addf %87, %90 : vector<1x256xf32>
    %92 = vector.extract_strided_slice %84 {offsets = [2, 0], sizes = [1, 256], strides = [1, 1]} : vector<15x256xf32> to vector<1x256xf32>
    %cst_21 = arith.constant 4.687500e-02 : f32
    %93 = vector.broadcast %cst_21 : f32 to vector<1x256xf32>
    %94 = arith.mulf %93, %92 : vector<1x256xf32>
    %95 = arith.addf %91, %94 : vector<1x256xf32>
    %96 = vector.extract_strided_slice %84 {offsets = [3, 0], sizes = [1, 256], strides = [1, 1]} : vector<15x256xf32> to vector<1x256xf32>
    %cst_22 = arith.constant 1.562500e-02 : f32
    %97 = vector.broadcast %cst_22 : f32 to vector<1x256xf32>
    %98 = arith.mulf %97, %96 : vector<1x256xf32>
    %99 = arith.addf %95, %98 : vector<1x256xf32>
    %100 = vector.extract_strided_slice %84 {offsets = [3, 0], sizes = [1, 256], strides = [1, 1]} : vector<15x256xf32> to vector<1x256xf32>
    %cst_23 = arith.constant 1.562500e-02 : f32
    %101 = vector.broadcast %cst_23 : f32 to vector<1x256xf32>
    %102 = arith.mulf %101, %100 : vector<1x256xf32>
    %103 = vector.extract_strided_slice %84 {offsets = [4, 0], sizes = [1, 256], strides = [1, 1]} : vector<15x256xf32> to vector<1x256xf32>
    %cst_24 = arith.constant 4.687500e-02 : f32
    %104 = vector.broadcast %cst_24 : f32 to vector<1x256xf32>
    %105 = arith.mulf %104, %103 : vector<1x256xf32>
    %106 = arith.addf %102, %105 : vector<1x256xf32>
    %107 = vector.extract_strided_slice %84 {offsets = [5, 0], sizes = [1, 256], strides = [1, 1]} : vector<15x256xf32> to vector<1x256xf32>
    %cst_25 = arith.constant 4.687500e-02 : f32
    %108 = vector.broadcast %cst_25 : f32 to vector<1x256xf32>
    %109 = arith.mulf %108, %107 : vector<1x256xf32>
    %110 = arith.addf %106, %109 : vector<1x256xf32>
    %111 = vector.extract_strided_slice %84 {offsets = [6, 0], sizes = [1, 256], strides = [1, 1]} : vector<15x256xf32> to vector<1x256xf32>
    %cst_26 = arith.constant 1.562500e-02 : f32
    %112 = vector.broadcast %cst_26 : f32 to vector<1x256xf32>
    %113 = arith.mulf %112, %111 : vector<1x256xf32>
    %114 = arith.addf %110, %113 : vector<1x256xf32>
    %115 = vector.extract_strided_slice %84 {offsets = [6, 0], sizes = [1, 256], strides = [1, 1]} : vector<15x256xf32> to vector<1x256xf32>
    %cst_27 = arith.constant 1.562500e-02 : f32
    %116 = vector.broadcast %cst_27 : f32 to vector<1x256xf32>
    %117 = arith.mulf %116, %115 : vector<1x256xf32>
    %118 = vector.extract_strided_slice %84 {offsets = [7, 0], sizes = [1, 256], strides = [1, 1]} : vector<15x256xf32> to vector<1x256xf32>
    %cst_28 = arith.constant 4.687500e-02 : f32
    %119 = vector.broadcast %cst_28 : f32 to vector<1x256xf32>
    %120 = arith.mulf %119, %118 : vector<1x256xf32>
    %121 = arith.addf %117, %120 : vector<1x256xf32>
    %122 = vector.extract_strided_slice %84 {offsets = [8, 0], sizes = [1, 256], strides = [1, 1]} : vector<15x256xf32> to vector<1x256xf32>
    %cst_29 = arith.constant 4.687500e-02 : f32
    %123 = vector.broadcast %cst_29 : f32 to vector<1x256xf32>
    %124 = arith.mulf %123, %122 : vector<1x256xf32>
    %125 = arith.addf %121, %124 : vector<1x256xf32>
    %126 = vector.extract_strided_slice %84 {offsets = [9, 0], sizes = [1, 256], strides = [1, 1]} : vector<15x256xf32> to vector<1x256xf32>
    %cst_30 = arith.constant 1.562500e-02 : f32
    %127 = vector.broadcast %cst_30 : f32 to vector<1x256xf32>
    %128 = arith.mulf %127, %126 : vector<1x256xf32>
    %129 = arith.addf %125, %128 : vector<1x256xf32>
    %130 = vector.extract_strided_slice %84 {offsets = [9, 0], sizes = [1, 256], strides = [1, 1]} : vector<15x256xf32> to vector<1x256xf32>
    %cst_31 = arith.constant 1.562500e-02 : f32
    %131 = vector.broadcast %cst_31 : f32 to vector<1x256xf32>
    %132 = arith.mulf %131, %130 : vector<1x256xf32>
    %133 = vector.extract_strided_slice %84 {offsets = [10, 0], sizes = [1, 256], strides = [1, 1]} : vector<15x256xf32> to vector<1x256xf32>
    %cst_32 = arith.constant 4.687500e-02 : f32
    %134 = vector.broadcast %cst_32 : f32 to vector<1x256xf32>
    %135 = arith.mulf %134, %133 : vector<1x256xf32>
    %136 = arith.addf %132, %135 : vector<1x256xf32>
    %137 = vector.extract_strided_slice %84 {offsets = [11, 0], sizes = [1, 256], strides = [1, 1]} : vector<15x256xf32> to vector<1x256xf32>
    %cst_33 = arith.constant 4.687500e-02 : f32
    %138 = vector.broadcast %cst_33 : f32 to vector<1x256xf32>
    %139 = arith.mulf %138, %137 : vector<1x256xf32>
    %140 = arith.addf %136, %139 : vector<1x256xf32>
    %141 = vector.extract_strided_slice %84 {offsets = [12, 0], sizes = [1, 256], strides = [1, 1]} : vector<15x256xf32> to vector<1x256xf32>
    %cst_34 = arith.constant 1.562500e-02 : f32
    %142 = vector.broadcast %cst_34 : f32 to vector<1x256xf32>
    %143 = arith.mulf %142, %141 : vector<1x256xf32>
    %144 = arith.addf %140, %143 : vector<1x256xf32>
    %145 = tpu.concatenate %99, %114, %129, %144 in 0 : vector<1x256xf32>, vector<1x256xf32>, vector<1x256xf32>, vector<1x256xf32> -> vector<4x256xf32>
    %cst_35 = arith.constant 0.000000e+00 : f32
    %146 = vector.broadcast %cst_35 : f32 to vector<4x256xf32>
    %cst_36 = arith.constant 0.000000e+00 : f32
    %147 = vector.broadcast %cst_36 : f32 to vector<4x768xf32>
    %148 = tpu.concatenate %146, %145, %146 in 1 : vector<4x256xf32>, vector<4x256xf32>, vector<4x256xf32> -> vector<4x768xf32>
    %149 = tpu.concatenate %147, %148, %147 in 0 : vector<4x768xf32>, vector<4x768xf32>, vector<4x768xf32> -> vector<12x768xf32>
    %c0_37 = arith.constant 0 : index
    %c0_38 = arith.constant 0 : index
    %150 = vector.load %arg2[%c0_37, %c0_38] : memref<45x256xf32, #tpu.memory_space<vmem>>, vector<45x256xf32>
    %cst_39 = arith.constant 0.000000e+00 : f32
    %151 = vector.broadcast %cst_39 : f32 to vector<4x256xf32>
    %152 = vector.extract_strided_slice %150 {offsets = [0, 0], sizes = [1, 256], strides = [1, 1]} : vector<45x256xf32> to vector<1x256xf32>
    %153 = vector.extract_strided_slice %149 {offsets = [0, 448], sizes = [4, 256], strides = [1, 1]} : vector<12x768xf32> to vector<4x256xf32>
    %154 = vector.broadcast %152 : vector<1x256xf32> to vector<4x256xf32>
    %155 = arith.mulf %154, %153 : vector<4x256xf32>
    %156 = arith.addf %151, %155 : vector<4x256xf32>
    %157 = vector.extract_strided_slice %150 {offsets = [1, 0], sizes = [1, 256], strides = [1, 1]} : vector<45x256xf32> to vector<1x256xf32>
    %158 = vector.extract_strided_slice %149 {offsets = [1, 192], sizes = [4, 256], strides = [1, 1]} : vector<12x768xf32> to vector<4x256xf32>
    %159 = vector.broadcast %157 : vector<1x256xf32> to vector<4x256xf32>
    %160 = arith.mulf %159, %158 : vector<4x256xf32>
    %161 = arith.addf %156, %160 : vector<4x256xf32>
    %162 = vector.extract_strided_slice %150 {offsets = [2, 0], sizes = [1, 256], strides = [1, 1]} : vector<45x256xf32> to vector<1x256xf32>
    %163 = vector.extract_strided_slice %149 {offsets = [1, 256], sizes = [4, 256], strides = [1, 1]} : vector<12x768xf32> to vector<4x256xf32>
    %164 = vector.broadcast %162 : vector<1x256xf32> to vector<4x256xf32>
    %165 = arith.mulf %164, %163 : vector<4x256xf32>
    %166 = arith.addf %161, %165 : vector<4x256xf32>
    %167 = vector.extract_strided_slice %150 {offsets = [3, 0], sizes = [1, 256], strides = [1, 1]} : vector<45x256xf32> to vector<1x256xf32>
    %168 = vector.extract_strided_slice %149 {offsets = [1, 320], sizes = [4, 256], strides = [1, 1]} : vector<12x768xf32> to vector<4x256xf32>
    %169 = vector.broadcast %167 : vector<1x256xf32> to vector<4x256xf32>
    %170 = arith.mulf %169, %168 : vector<4x256xf32>
    %171 = arith.addf %166, %170 : vector<4x256xf32>
    %172 = vector.extract_strided_slice %150 {offsets = [4, 0], sizes = [1, 256], strides = [1, 1]} : vector<45x256xf32> to vector<1x256xf32>
    %173 = vector.extract_strided_slice %149 {offsets = [1, 384], sizes = [4, 256], strides = [1, 1]} : vector<12x768xf32> to vector<4x256xf32>
    %174 = vector.broadcast %172 : vector<1x256xf32> to vector<4x256xf32>
    %175 = arith.mulf %174, %173 : vector<4x256xf32>
    %176 = arith.addf %171, %175 : vector<4x256xf32>
    %177 = vector.extract_strided_slice %150 {offsets = [5, 0], sizes = [1, 256], strides = [1, 1]} : vector<45x256xf32> to vector<1x256xf32>
    %178 = vector.extract_strided_slice %149 {offsets = [1, 448], sizes = [4, 256], strides = [1, 1]} : vector<12x768xf32> to vector<4x256xf32>
    %179 = vector.broadcast %177 : vector<1x256xf32> to vector<4x256xf32>
    %180 = arith.mulf %179, %178 : vector<4x256xf32>
    %181 = arith.addf %176, %180 : vector<4x256xf32>
    %182 = vector.extract_strided_slice %150 {offsets = [6, 0], sizes = [1, 256], strides = [1, 1]} : vector<45x256xf32> to vector<1x256xf32>
    %183 = vector.extract_strided_slice %149 {offsets = [1, 512], sizes = [4, 256], strides = [1, 1]} : vector<12x768xf32> to vector<4x256xf32>
    %184 = vector.broadcast %182 : vector<1x256xf32> to vector<4x256xf32>
    %185 = arith.mulf %184, %183 : vector<4x256xf32>
    %186 = arith.addf %181, %185 : vector<4x256xf32>
    %187 = vector.extract_strided_slice %150 {offsets = [7, 0], sizes = [1, 256], strides = [1, 1]} : vector<45x256xf32> to vector<1x256xf32>
    %188 = vector.extract_strided_slice %149 {offsets = [2, 192], sizes = [4, 256], strides = [1, 1]} : vector<12x768xf32> to vector<4x256xf32>
    %189 = vector.broadcast %187 : vector<1x256xf32> to vector<4x256xf32>
    %190 = arith.mulf %189, %188 : vector<4x256xf32>
    %191 = arith.addf %186, %190 : vector<4x256xf32>
    %192 = vector.extract_strided_slice %150 {offsets = [8, 0], sizes = [1, 256], strides = [1, 1]} : vector<45x256xf32> to vector<1x256xf32>
    %193 = vector.extract_strided_slice %149 {offsets = [2, 256], sizes = [4, 256], strides = [1, 1]} : vector<12x768xf32> to vector<4x256xf32>
    %194 = vector.broadcast %192 : vector<1x256xf32> to vector<4x256xf32>
    %195 = arith.mulf %194, %193 : vector<4x256xf32>
    %196 = arith.addf %191, %195 : vector<4x256xf32>
    %197 = vector.extract_strided_slice %150 {offsets = [9, 0], sizes = [1, 256], strides = [1, 1]} : vector<45x256xf32> to vector<1x256xf32>
    %198 = vector.extract_strided_slice %149 {offsets = [2, 320], sizes = [4, 256], strides = [1, 1]} : vector<12x768xf32> to vector<4x256xf32>
    %199 = vector.broadcast %197 : vector<1x256xf32> to vector<4x256xf32>
    %200 = arith.mulf %199, %198 : vector<4x256xf32>
    %201 = arith.addf %196, %200 : vector<4x256xf32>
    %202 = vector.extract_strided_slice %150 {offsets = [10, 0], sizes = [1, 256], strides = [1, 1]} : vector<45x256xf32> to vector<1x256xf32>
    %203 = vector.extract_strided_slice %149 {offsets = [2, 384], sizes = [4, 256], strides = [1, 1]} : vector<12x768xf32> to vector<4x256xf32>
    %204 = vector.broadcast %202 : vector<1x256xf32> to vector<4x256xf32>
    %205 = arith.mulf %204, %203 : vector<4x256xf32>
    %206 = arith.addf %201, %205 : vector<4x256xf32>
    %207 = vector.extract_strided_slice %150 {offsets = [11, 0], sizes = [1, 256], strides = [1, 1]} : vector<45x256xf32> to vector<1x256xf32>
    %208 = vector.extract_strided_slice %149 {offsets = [2, 448], sizes = [4, 256], strides = [1, 1]} : vector<12x768xf32> to vector<4x256xf32>
    %209 = vector.broadcast %207 : vector<1x256xf32> to vector<4x256xf32>
    %210 = arith.mulf %209, %208 : vector<4x256xf32>
    %211 = arith.addf %206, %210 : vector<4x256xf32>
    %212 = vector.extract_strided_slice %150 {offsets = [12, 0], sizes = [1, 256], strides = [1, 1]} : vector<45x256xf32> to vector<1x256xf32>
    %213 = vector.extract_strided_slice %149 {offsets = [3, 64], sizes = [4, 256], strides = [1, 1]} : vector<12x768xf32> to vector<4x256xf32>
    %214 = vector.broadcast %212 : vector<1x256xf32> to vector<4x256xf32>
    %215 = arith.mulf %214, %213 : vector<4x256xf32>
    %216 = arith.addf %211, %215 : vector<4x256xf32>
    %217 = vector.extract_strided_slice %150 {offsets = [13, 0], sizes = [1, 256], strides = [1, 1]} : vector<45x256xf32> to vector<1x256xf32>
    %218 = vector.extract_strided_slice %149 {offsets = [3, 128], sizes = [4, 256], strides = [1, 1]} : vector<12x768xf32> to vector<4x256xf32>
    %219 = vector.broadcast %217 : vector<1x256xf32> to vector<4x256xf32>
    %220 = arith.mulf %219, %218 : vector<4x256xf32>
    %221 = arith.addf %216, %220 : vector<4x256xf32>
    %222 = vector.extract_strided_slice %150 {offsets = [14, 0], sizes = [1, 256], strides = [1, 1]} : vector<45x256xf32> to vector<1x256xf32>
    %223 = vector.extract_strided_slice %149 {offsets = [3, 192], sizes = [4, 256], strides = [1, 1]} : vector<12x768xf32> to vector<4x256xf32>
    %224 = vector.broadcast %222 : vector<1x256xf32> to vector<4x256xf32>
    %225 = arith.mulf %224, %223 : vector<4x256xf32>
    %226 = arith.addf %221, %225 : vector<4x256xf32>
    %227 = vector.extract_strided_slice %150 {offsets = [15, 0], sizes = [1, 256], strides = [1, 1]} : vector<45x256xf32> to vector<1x256xf32>
    %228 = vector.extract_strided_slice %149 {offsets = [3, 256], sizes = [4, 256], strides = [1, 1]} : vector<12x768xf32> to vector<4x256xf32>
    %229 = vector.broadcast %227 : vector<1x256xf32> to vector<4x256xf32>
    %230 = arith.mulf %229, %228 : vector<4x256xf32>
    %231 = arith.addf %226, %230 : vector<4x256xf32>
    %232 = vector.extract_strided_slice %150 {offsets = [16, 0], sizes = [1, 256], strides = [1, 1]} : vector<45x256xf32> to vector<1x256xf32>
    %233 = vector.extract_strided_slice %149 {offsets = [3, 320], sizes = [4, 256], strides = [1, 1]} : vector<12x768xf32> to vector<4x256xf32>
    %234 = vector.broadcast %232 : vector<1x256xf32> to vector<4x256xf32>
    %235 = arith.mulf %234, %233 : vector<4x256xf32>
    %236 = arith.addf %231, %235 : vector<4x256xf32>
    %237 = vector.extract_strided_slice %150 {offsets = [17, 0], sizes = [1, 256], strides = [1, 1]} : vector<45x256xf32> to vector<1x256xf32>
    %238 = vector.extract_strided_slice %149 {offsets = [3, 384], sizes = [4, 256], strides = [1, 1]} : vector<12x768xf32> to vector<4x256xf32>
    %239 = vector.broadcast %237 : vector<1x256xf32> to vector<4x256xf32>
    %240 = arith.mulf %239, %238 : vector<4x256xf32>
    %241 = arith.addf %236, %240 : vector<4x256xf32>
    %242 = vector.extract_strided_slice %150 {offsets = [18, 0], sizes = [1, 256], strides = [1, 1]} : vector<45x256xf32> to vector<1x256xf32>
    %243 = vector.extract_strided_slice %149 {offsets = [3, 448], sizes = [4, 256], strides = [1, 1]} : vector<12x768xf32> to vector<4x256xf32>
    %244 = vector.broadcast %242 : vector<1x256xf32> to vector<4x256xf32>
    %245 = arith.mulf %244, %243 : vector<4x256xf32>
    %246 = arith.addf %241, %245 : vector<4x256xf32>
    %247 = vector.extract_strided_slice %150 {offsets = [19, 0], sizes = [1, 256], strides = [1, 1]} : vector<45x256xf32> to vector<1x256xf32>
    %248 = vector.extract_strided_slice %149 {offsets = [4, 64], sizes = [4, 256], strides = [1, 1]} : vector<12x768xf32> to vector<4x256xf32>
    %249 = vector.broadcast %247 : vector<1x256xf32> to vector<4x256xf32>
    %250 = arith.mulf %249, %248 : vector<4x256xf32>
    %251 = arith.addf %246, %250 : vector<4x256xf32>
    %252 = vector.extract_strided_slice %150 {offsets = [20, 0], sizes = [1, 256], strides = [1, 1]} : vector<45x256xf32> to vector<1x256xf32>
    %253 = vector.extract_strided_slice %149 {offsets = [4, 128], sizes = [4, 256], strides = [1, 1]} : vector<12x768xf32> to vector<4x256xf32>
    %254 = vector.broadcast %252 : vector<1x256xf32> to vector<4x256xf32>
    %255 = arith.mulf %254, %253 : vector<4x256xf32>
    %256 = arith.addf %251, %255 : vector<4x256xf32>
    %257 = vector.extract_strided_slice %150 {offsets = [21, 0], sizes = [1, 256], strides = [1, 1]} : vector<45x256xf32> to vector<1x256xf32>
    %258 = vector.extract_strided_slice %149 {offsets = [4, 192], sizes = [4, 256], strides = [1, 1]} : vector<12x768xf32> to vector<4x256xf32>
    %259 = vector.broadcast %257 : vector<1x256xf32> to vector<4x256xf32>
    %260 = arith.mulf %259, %258 : vector<4x256xf32>
    %261 = arith.addf %256, %260 : vector<4x256xf32>
    %262 = vector.extract_strided_slice %150 {offsets = [22, 0], sizes = [1, 256], strides = [1, 1]} : vector<45x256xf32> to vector<1x256xf32>
    %263 = vector.extract_strided_slice %149 {offsets = [4, 256], sizes = [4, 256], strides = [1, 1]} : vector<12x768xf32> to vector<4x256xf32>
    %264 = vector.broadcast %262 : vector<1x256xf32> to vector<4x256xf32>
    %265 = arith.mulf %264, %263 : vector<4x256xf32>
    %266 = arith.addf %261, %265 : vector<4x256xf32>
    %267 = vector.extract_strided_slice %150 {offsets = [23, 0], sizes = [1, 256], strides = [1, 1]} : vector<45x256xf32> to vector<1x256xf32>
    %268 = vector.extract_strided_slice %149 {offsets = [4, 320], sizes = [4, 256], strides = [1, 1]} : vector<12x768xf32> to vector<4x256xf32>
    %269 = vector.broadcast %267 : vector<1x256xf32> to vector<4x256xf32>
    %270 = arith.mulf %269, %268 : vector<4x256xf32>
    %271 = arith.addf %266, %270 : vector<4x256xf32>
    %272 = vector.extract_strided_slice %150 {offsets = [24, 0], sizes = [1, 256], strides = [1, 1]} : vector<45x256xf32> to vector<1x256xf32>
    %273 = vector.extract_strided_slice %149 {offsets = [4, 384], sizes = [4, 256], strides = [1, 1]} : vector<12x768xf32> to vector<4x256xf32>
    %274 = vector.broadcast %272 : vector<1x256xf32> to vector<4x256xf32>
    %275 = arith.mulf %274, %273 : vector<4x256xf32>
    %276 = arith.addf %271, %275 : vector<4x256xf32>
    %277 = vector.extract_strided_slice %150 {offsets = [25, 0], sizes = [1, 256], strides = [1, 1]} : vector<45x256xf32> to vector<1x256xf32>
    %278 = vector.extract_strided_slice %149 {offsets = [4, 448], sizes = [4, 256], strides = [1, 1]} : vector<12x768xf32> to vector<4x256xf32>
    %279 = vector.broadcast %277 : vector<1x256xf32> to vector<4x256xf32>
    %280 = arith.mulf %279, %278 : vector<4x256xf32>
    %281 = arith.addf %276, %280 : vector<4x256xf32>
    %282 = vector.extract_strided_slice %150 {offsets = [26, 0], sizes = [1, 256], strides = [1, 1]} : vector<45x256xf32> to vector<1x256xf32>
    %283 = vector.extract_strided_slice %149 {offsets = [5, 64], sizes = [4, 256], strides = [1, 1]} : vector<12x768xf32> to vector<4x256xf32>
    %284 = vector.broadcast %282 : vector<1x256xf32> to vector<4x256xf32>
    %285 = arith.mulf %284, %283 : vector<4x256xf32>
    %286 = arith.addf %281, %285 : vector<4x256xf32>
    %287 = vector.extract_strided_slice %150 {offsets = [27, 0], sizes = [1, 256], strides = [1, 1]} : vector<45x256xf32> to vector<1x256xf32>
    %288 = vector.extract_strided_slice %149 {offsets = [5, 128], sizes = [4, 256], strides = [1, 1]} : vector<12x768xf32> to vector<4x256xf32>
    %289 = vector.broadcast %287 : vector<1x256xf32> to vector<4x256xf32>
    %290 = arith.mulf %289, %288 : vector<4x256xf32>
    %291 = arith.addf %286, %290 : vector<4x256xf32>
    %292 = vector.extract_strided_slice %150 {offsets = [28, 0], sizes = [1, 256], strides = [1, 1]} : vector<45x256xf32> to vector<1x256xf32>
    %293 = vector.extract_strided_slice %149 {offsets = [5, 192], sizes = [4, 256], strides = [1, 1]} : vector<12x768xf32> to vector<4x256xf32>
    %294 = vector.broadcast %292 : vector<1x256xf32> to vector<4x256xf32>
    %295 = arith.mulf %294, %293 : vector<4x256xf32>
    %296 = arith.addf %291, %295 : vector<4x256xf32>
    %297 = vector.extract_strided_slice %150 {offsets = [29, 0], sizes = [1, 256], strides = [1, 1]} : vector<45x256xf32> to vector<1x256xf32>
    %298 = vector.extract_strided_slice %149 {offsets = [5, 256], sizes = [4, 256], strides = [1, 1]} : vector<12x768xf32> to vector<4x256xf32>
    %299 = vector.broadcast %297 : vector<1x256xf32> to vector<4x256xf32>
    %300 = arith.mulf %299, %298 : vector<4x256xf32>
    %301 = arith.addf %296, %300 : vector<4x256xf32>
    %302 = vector.extract_strided_slice %150 {offsets = [30, 0], sizes = [1, 256], strides = [1, 1]} : vector<45x256xf32> to vector<1x256xf32>
    %303 = vector.extract_strided_slice %149 {offsets = [5, 320], sizes = [4, 256], strides = [1, 1]} : vector<12x768xf32> to vector<4x256xf32>
    %304 = vector.broadcast %302 : vector<1x256xf32> to vector<4x256xf32>
    %305 = arith.mulf %304, %303 : vector<4x256xf32>
    %306 = arith.addf %301, %305 : vector<4x256xf32>
    %307 = vector.extract_strided_slice %150 {offsets = [31, 0], sizes = [1, 256], strides = [1, 1]} : vector<45x256xf32> to vector<1x256xf32>
    %308 = vector.extract_strided_slice %149 {offsets = [5, 384], sizes = [4, 256], strides = [1, 1]} : vector<12x768xf32> to vector<4x256xf32>
    %309 = vector.broadcast %307 : vector<1x256xf32> to vector<4x256xf32>
    %310 = arith.mulf %309, %308 : vector<4x256xf32>
    %311 = arith.addf %306, %310 : vector<4x256xf32>
    %312 = vector.extract_strided_slice %150 {offsets = [32, 0], sizes = [1, 256], strides = [1, 1]} : vector<45x256xf32> to vector<1x256xf32>
    %313 = vector.extract_strided_slice %149 {offsets = [5, 448], sizes = [4, 256], strides = [1, 1]} : vector<12x768xf32> to vector<4x256xf32>
    %314 = vector.broadcast %312 : vector<1x256xf32> to vector<4x256xf32>
    %315 = arith.mulf %314, %313 : vector<4x256xf32>
    %316 = arith.addf %311, %315 : vector<4x256xf32>
    %317 = vector.extract_strided_slice %150 {offsets = [33, 0], sizes = [1, 256], strides = [1, 1]} : vector<45x256xf32> to vector<1x256xf32>
    %318 = vector.extract_strided_slice %149 {offsets = [6, 64], sizes = [4, 256], strides = [1, 1]} : vector<12x768xf32> to vector<4x256xf32>
    %319 = vector.broadcast %317 : vector<1x256xf32> to vector<4x256xf32>
    %320 = arith.mulf %319, %318 : vector<4x256xf32>
    %321 = arith.addf %316, %320 : vector<4x256xf32>
    %322 = vector.extract_strided_slice %150 {offsets = [34, 0], sizes = [1, 256], strides = [1, 1]} : vector<45x256xf32> to vector<1x256xf32>
    %323 = vector.extract_strided_slice %149 {offsets = [6, 128], sizes = [4, 256], strides = [1, 1]} : vector<12x768xf32> to vector<4x256xf32>
    %324 = vector.broadcast %322 : vector<1x256xf32> to vector<4x256xf32>
    %325 = arith.mulf %324, %323 : vector<4x256xf32>
    %326 = arith.addf %321, %325 : vector<4x256xf32>
    %327 = vector.extract_strided_slice %150 {offsets = [35, 0], sizes = [1, 256], strides = [1, 1]} : vector<45x256xf32> to vector<1x256xf32>
    %328 = vector.extract_strided_slice %149 {offsets = [6, 192], sizes = [4, 256], strides = [1, 1]} : vector<12x768xf32> to vector<4x256xf32>
    %329 = vector.broadcast %327 : vector<1x256xf32> to vector<4x256xf32>
    %330 = arith.mulf %329, %328 : vector<4x256xf32>
    %331 = arith.addf %326, %330 : vector<4x256xf32>
    %332 = vector.extract_strided_slice %150 {offsets = [36, 0], sizes = [1, 256], strides = [1, 1]} : vector<45x256xf32> to vector<1x256xf32>
    %333 = vector.extract_strided_slice %149 {offsets = [6, 256], sizes = [4, 256], strides = [1, 1]} : vector<12x768xf32> to vector<4x256xf32>
    %334 = vector.broadcast %332 : vector<1x256xf32> to vector<4x256xf32>
    %335 = arith.mulf %334, %333 : vector<4x256xf32>
    %336 = arith.addf %331, %335 : vector<4x256xf32>
    %337 = vector.extract_strided_slice %150 {offsets = [37, 0], sizes = [1, 256], strides = [1, 1]} : vector<45x256xf32> to vector<1x256xf32>
    %338 = vector.extract_strided_slice %149 {offsets = [6, 320], sizes = [4, 256], strides = [1, 1]} : vector<12x768xf32> to vector<4x256xf32>
    %339 = vector.broadcast %337 : vector<1x256xf32> to vector<4x256xf32>
    %340 = arith.mulf %339, %338 : vector<4x256xf32>
    %341 = arith.addf %336, %340 : vector<4x256xf32>
    %342 = vector.extract_strided_slice %150 {offsets = [38, 0], sizes = [1, 256], strides = [1, 1]} : vector<45x256xf32> to vector<1x256xf32>
    %343 = vector.extract_strided_slice %149 {offsets = [7, 0], sizes = [4, 256], strides = [1, 1]} : vector<12x768xf32> to vector<4x256xf32>
    %344 = vector.broadcast %342 : vector<1x256xf32> to vector<4x256xf32>
    %345 = arith.mulf %344, %343 : vector<4x256xf32>
    %346 = arith.addf %341, %345 : vector<4x256xf32>
    %347 = vector.extract_strided_slice %150 {offsets = [39, 0], sizes = [1, 256], strides = [1, 1]} : vector<45x256xf32> to vector<1x256xf32>
    %348 = vector.extract_strided_slice %149 {offsets = [7, 64], sizes = [4, 256], strides = [1, 1]} : vector<12x768xf32> to vector<4x256xf32>
    %349 = vector.broadcast %347 : vector<1x256xf32> to vector<4x256xf32>
    %350 = arith.mulf %349, %348 : vector<4x256xf32>
    %351 = arith.addf %346, %350 : vector<4x256xf32>
    %352 = vector.extract_strided_slice %150 {offsets = [40, 0], sizes = [1, 256], strides = [1, 1]} : vector<45x256xf32> to vector<1x256xf32>
    %353 = vector.extract_strided_slice %149 {offsets = [7, 128], sizes = [4, 256], strides = [1, 1]} : vector<12x768xf32> to vector<4x256xf32>
    %354 = vector.broadcast %352 : vector<1x256xf32> to vector<4x256xf32>
    %355 = arith.mulf %354, %353 : vector<4x256xf32>
    %356 = arith.addf %351, %355 : vector<4x256xf32>
    %357 = vector.extract_strided_slice %150 {offsets = [41, 0], sizes = [1, 256], strides = [1, 1]} : vector<45x256xf32> to vector<1x256xf32>
    %358 = vector.extract_strided_slice %149 {offsets = [7, 192], sizes = [4, 256], strides = [1, 1]} : vector<12x768xf32> to vector<4x256xf32>
    %359 = vector.broadcast %357 : vector<1x256xf32> to vector<4x256xf32>
    %360 = arith.mulf %359, %358 : vector<4x256xf32>
    %361 = arith.addf %356, %360 : vector<4x256xf32>
    %362 = vector.extract_strided_slice %150 {offsets = [42, 0], sizes = [1, 256], strides = [1, 1]} : vector<45x256xf32> to vector<1x256xf32>
    %363 = vector.extract_strided_slice %149 {offsets = [7, 256], sizes = [4, 256], strides = [1, 1]} : vector<12x768xf32> to vector<4x256xf32>
    %364 = vector.broadcast %362 : vector<1x256xf32> to vector<4x256xf32>
    %365 = arith.mulf %364, %363 : vector<4x256xf32>
    %366 = arith.addf %361, %365 : vector<4x256xf32>
    %367 = vector.extract_strided_slice %150 {offsets = [43, 0], sizes = [1, 256], strides = [1, 1]} : vector<45x256xf32> to vector<1x256xf32>
    %368 = vector.extract_strided_slice %149 {offsets = [7, 320], sizes = [4, 256], strides = [1, 1]} : vector<12x768xf32> to vector<4x256xf32>
    %369 = vector.broadcast %367 : vector<1x256xf32> to vector<4x256xf32>
    %370 = arith.mulf %369, %368 : vector<4x256xf32>
    %371 = arith.addf %366, %370 : vector<4x256xf32>
    %372 = vector.extract_strided_slice %150 {offsets = [44, 0], sizes = [1, 256], strides = [1, 1]} : vector<45x256xf32> to vector<1x256xf32>
    %373 = vector.extract_strided_slice %149 {offsets = [8, 64], sizes = [4, 256], strides = [1, 1]} : vector<12x768xf32> to vector<4x256xf32>
    %374 = vector.broadcast %372 : vector<1x256xf32> to vector<4x256xf32>
    %375 = arith.mulf %374, %373 : vector<4x256xf32>
    %376 = arith.addf %371, %375 : vector<4x256xf32>
    %c0_40 = arith.constant 0 : index
    %c0_41 = arith.constant 0 : index
    %377 = vector.load %arg3[%c0_40, %c0_41] : memref<2x256xf32, #tpu.memory_space<vmem>>, vector<2x256xf32>
    %378 = vector.extract_strided_slice %377 {offsets = [0, 0], sizes = [1, 256], strides = [1, 1]} : vector<2x256xf32> to vector<1x256xf32>
    %379 = vector.broadcast %378 : vector<1x256xf32> to vector<4x256xf32>
    %380 = arith.mulf %376, %379 : vector<4x256xf32>
    %381 = vector.extract_strided_slice %377 {offsets = [1, 0], sizes = [1, 256], strides = [1, 1]} : vector<2x256xf32> to vector<1x256xf32>
    %382 = vector.broadcast %381 : vector<1x256xf32> to vector<4x256xf32>
    %383 = arith.addf %380, %382 : vector<4x256xf32>
    %cst_42 = arith.constant 0.000000e+00 : f32
    %384 = vector.broadcast %cst_42 : f32 to vector<4x256xf32>
    %385 = arith.subf %384, %383 : vector<4x256xf32>
    %386 = math.exp %385 : vector<4x256xf32>
    %cst_43 = arith.constant 1.000000e+00 : f32
    %387 = vector.broadcast %cst_43 : f32 to vector<4x256xf32>
    %388 = arith.addf %387, %386 : vector<4x256xf32>
    %cst_44 = arith.constant 1.000000e+00 : f32
    %389 = vector.broadcast %cst_44 : f32 to vector<4x256xf32>
    %390 = arith.divf %389, %388 : vector<4x256xf32>
    %391 = vector.extract_strided_slice %390 {offsets = [0, 0], sizes = [4, 64], strides = [1, 1]} : vector<4x256xf32> to vector<4x64xf32>
    %392 = vector.extract_strided_slice %390 {offsets = [0, 64], sizes = [4, 64], strides = [1, 1]} : vector<4x256xf32> to vector<4x64xf32>
    %393 = vector.extract_strided_slice %390 {offsets = [0, 128], sizes = [4, 64], strides = [1, 1]} : vector<4x256xf32> to vector<4x64xf32>
    %394 = vector.extract_strided_slice %390 {offsets = [0, 192], sizes = [4, 64], strides = [1, 1]} : vector<4x256xf32> to vector<4x64xf32>
    %395 = tpu.concatenate %391, %391, %391, %392, %392, %392, %393, %393, %393, %394, %394, %394 in 1 : vector<4x64xf32>, vector<4x64xf32>, vector<4x64xf32>, vector<4x64xf32>, vector<4x64xf32>, vector<4x64xf32>, vector<4x64xf32>, vector<4x64xf32>, vector<4x64xf32>, vector<4x64xf32>, vector<4x64xf32>, vector<4x64xf32> -> vector<4x768xf32>
    %396 = vector.extract_strided_slice %395 {offsets = [0, 0], sizes = [1, 768], strides = [1, 1]} : vector<4x768xf32> to vector<1x768xf32>
    %397 = vector.extract_strided_slice %395 {offsets = [1, 0], sizes = [1, 768], strides = [1, 1]} : vector<4x768xf32> to vector<1x768xf32>
    %398 = vector.extract_strided_slice %395 {offsets = [2, 0], sizes = [1, 768], strides = [1, 1]} : vector<4x768xf32> to vector<1x768xf32>
    %399 = vector.extract_strided_slice %395 {offsets = [3, 0], sizes = [1, 768], strides = [1, 1]} : vector<4x768xf32> to vector<1x768xf32>
    %400 = tpu.concatenate %396, %396, %396, %397, %397, %397, %398, %398, %398, %399, %399, %399 in 0 : vector<1x768xf32>, vector<1x768xf32>, vector<1x768xf32>, vector<1x768xf32>, vector<1x768xf32>, vector<1x768xf32>, vector<1x768xf32>, vector<1x768xf32>, vector<1x768xf32>, vector<1x768xf32>, vector<1x768xf32>, vector<1x768xf32> -> vector<12x768xf32>
    %401 = arith.mulf %1, %400 : vector<12x768xf32>
    %c0_45 = arith.constant 0 : index
    %c0_46 = arith.constant 0 : index
    %c0_47 = arith.constant 0 : index
    %402 = vector.load %arg4[%c0_45, %c0_46, %c0_47] : memref<1x12x768xf32, #tpu.memory_space<vmem>>, vector<1x12x768xf32>
    %403 = vector.shape_cast %402 : vector<1x12x768xf32> to vector<12x768xf32>
    %404 = vector.shape_cast %401 : vector<12x768xf32> to vector<1x12x768xf32>
    tpu.vector_store %arg4[%c0_45, %c0_46, %c0_47], %404 {strides = array<i32>} : memref<1x12x768xf32, #tpu.memory_space<vmem>>, vector<1x12x768xf32>,
    return
  }
  func.func @transform_0(%arg0: i32) -> (i32, i32, i32) {
    %c0_i32 = arith.constant 0 : i32
    %c0_i32_0 = arith.constant 0 : i32
    %c0_i32_1 = arith.constant 0 : i32
    return %arg0, %c0_i32, %c0_i32_0 : i32, i32, i32
  }
  func.func @transform_1(%arg0: i32) -> (i32, i32) {
    %c0_i32 = arith.constant 0 : i32
    %c0_i32_0 = arith.constant 0 : i32
    %c0_i32_1 = arith.constant 0 : i32
    return %c0_i32, %c0_i32_0 : i32, i32
  }
  func.func @transform_2(%arg0: i32) -> (i32, i32) {
    %c0_i32 = arith.constant 0 : i32
    %c0_i32_0 = arith.constant 0 : i32
    %c0_i32_1 = arith.constant 0 : i32
    return %c0_i32, %c0_i32_0 : i32, i32
  }
  func.func @transform_3(%arg0: i32) -> (i32, i32, i32) {
    %c0_i32 = arith.constant 0 : i32
    %c0_i32_0 = arith.constant 0 : i32
    %c0_i32_1 = arith.constant 0 : i32
    return %arg0, %c0_i32, %c0_i32_0 : i32, i32, i32
  }
}

</mosaic_0001>

<llo_original>
// kernel: tile.14
$region0: #{tile.14}
  %s0 = inlined_call_operand.vmem [shape: f32[45,4,64], index: 0, kind: input, shape index: {}]
  %s1 = inlined_call_operand.vmem [shape: f32[45,256], index: 1, kind: output, shape index: {}]
  $region1: #{tile.14} parent=0
    #allocation0 [shape = 'u8[184320]{0}', space=vmem, size = 0x2d000, scoped, tag = 'scoped mem for input reshape']
    %s3 = sshll.u32 1, 4
    %s4 = ssub.s32 %s3, 1
    %s5 = smul.addr 4, 44
    %s6 = scalar_lea.vmem %s0, %s5
    %v7 = vld [vmem:[%s6] sm:%s4]
    %s8 = scalar_lea.vmem [#allocation0], 352
    %9 = vst [vmem:[%s8] sm:%s4] %v7
    %s10 = smul.addr 4, 43
    %s11 = scalar_lea.vmem %s0, %s10
    %v12 = vld [vmem:[%s11] sm:%s4]
    %s13 = scalar_lea.vmem [#allocation0], 344
    %14 = vst [vmem:[%s13] sm:%s4] %v12
    %s15 = smul.addr 4, 42
    %s16 = scalar_lea.vmem %s0, %s15
    %v17 = vld [vmem:[%s16] sm:%s4]
    %s18 = scalar_lea.vmem [#allocation0], 336
    %19 = vst [vmem:[%s18] sm:%s4] %v17
    %s20 = smul.addr 4, 41
    %s21 = scalar_lea.vmem %s0, %s20
    %v22 = vld [vmem:[%s21] sm:%s4]
    %s23 = scalar_lea.vmem [#allocation0], 328
    %24 = vst [vmem:[%s23] sm:%s4] %v22
    %s25 = smul.addr 4, 40
    %s26 = scalar_lea.vmem %s0, %s25
    %v27 = vld [vmem:[%s26] sm:%s4]
    %s28 = scalar_lea.vmem [#allocation0], 320
    %29 = vst [vmem:[%s28] sm:%s4] %v27
    %s30 = smul.addr 4, 39
    %s31 = scalar_lea.vmem %s0, %s30
    %v32 = vld [vmem:[%s31] sm:%s4]
    %s33 = scalar_lea.vmem [#allocation0], 312
    %34 = vst [vmem:[%s33] sm:%s4] %v32
    %s35 = smul.addr 4, 38
    %s36 = scalar_lea.vmem %s0, %s35
    %v37 = vld [vmem:[%s36] sm:%s4]
    %s38 = scalar_lea.vmem [#allocation0], 304
    %39 = vst [vmem:[%s38] sm:%s4] %v37
    %s40 = smul.addr 4, 37
    %s41 = scalar_lea.vmem %s0, %s40
    %v42 = vld [vmem:[%s41] sm:%s4]
    %s43 = scalar_lea.vmem [#allocation0], 296
    %44 = vst [vmem:[%s43] sm:%s4] %v42
    %s45 = smul.addr 4, 36
    %s46 = scalar_lea.vmem %s0, %s45
    %v47 = vld [vmem:[%s46] sm:%s4]
    %s48 = scalar_lea.vmem [#allocation0], 288
    %49 = vst [vmem:[%s48] sm:%s4] %v47
    %s50 = smul.addr 4, 35
    %s51 = scalar_lea.vmem %s0, %s50
    %v52 = vld [vmem:[%s51] sm:%s4]
    %s53 = scalar_lea.vmem [#allocation0], 280
    %54 = vst [vmem:[%s53] sm:%s4] %v52
    %s55 = smul.addr 4, 34
    %s56 = scalar_lea.vmem %s0, %s55
    %v57 = vld [vmem:[%s56] sm:%s4]
    %s58 = scalar_lea.vmem [#allocation0], 272
    %59 = vst [vmem:[%s58] sm:%s4] %v57
    %s60 = smul.addr 4, 33
    %s61 = scalar_lea.vmem %s0, %s60
    %v62 = vld [vmem:[%s61] sm:%s4]
    %s63 = scalar_lea.vmem [#allocation0], 264
    %64 = vst [vmem:[%s63] sm:%s4] %v62
    %s65 = smul.addr 4, 32
    %s66 = scalar_lea.vmem %s0, %s65
    %v67 = vld [vmem:[%s66] sm:%s4]
    %s68 = scalar_lea.vmem [#allocation0], 256
    %69 = vst [vmem:[%s68] sm:%s4] %v67
    %s70 = smul.addr 4, 31
    %s71 = scalar_lea.vmem %s0, %s70
    %v72 = vld [vmem:[%s71] sm:%s4]
    %s73 = scalar_lea.vmem [#allocation0], 248
    %74 = vst [vmem:[%s73] sm:%s4] %v72
    %s75 = smul.addr 4, 30
    %s76 = scalar_lea.vmem %s0, %s75
    %v77 = vld [vmem:[%s76] sm:%s4]
    %s78 = scalar_lea.vmem [#allocation0], 240
    %79 = vst [vmem:[%s78] sm:%s4] %v77
    %s80 = smul.addr 4, 29
    %s81 = scalar_lea.vmem %s0, %s80
    %v82 = vld [vmem:[%s81] sm:%s4]
    %s83 = scalar_lea.vmem [#allocation0], 232
    %84 = vst [vmem:[%s83] sm:%s4] %v82
    %s85 = smul.addr 4, 28
    %s86 = scalar_lea.vmem %s0, %s85
    %v87 = vld [vmem:[%s86] sm:%s4]
    %s88 = scalar_lea.vmem [#allocation0], 224
    %89 = vst [vmem:[%s88] sm:%s4] %v87
    %s90 = smul.addr 4, 27
    %s91 = scalar_lea.vmem %s0, %s90
    %v92 = vld [vmem:[%s91] sm:%s4]
    %s93 = scalar_lea.vmem [#allocation0], 216
    %94 = vst [vmem:[%s93] sm:%s4] %v92
    %s95 = smul.addr 4, 26
    %s96 = scalar_lea.vmem %s0, %s95
    %v97 = vld [vmem:[%s96] sm:%s4]
    %s98 = scalar_lea.vmem [#allocation0], 208
    %99 = vst [vmem:[%s98] sm:%s4] %v97
    %s100 = smul.addr 4, 25
    %s101 = scalar_lea.vmem %s0, %s100
    %v102 = vld [vmem:[%s101] sm:%s4]
    %s103 = scalar_lea.vmem [#allocation0], 200
    %104 = vst [vmem:[%s103] sm:%s4] %v102
    %s105 = smul.addr 4, 24
    %s106 = scalar_lea.vmem %s0, %s105
    %v107 = vld [vmem:[%s106] sm:%s4]
    %s108 = scalar_lea.vmem [#allocation0], 192
    %109 = vst [vmem:[%s108] sm:%s4] %v107
    %s110 = smul.addr 4, 23
    %s111 = scalar_lea.vmem %s0, %s110
    %v112 = vld [vmem:[%s111] sm:%s4]
    %s113 = scalar_lea.vmem [#allocation0], 184
    %114 = vst [vmem:[%s113] sm:%s4] %v112
    %s115 = smul.addr 4, 22
    %s116 = scalar_lea.vmem %s0, %s115
    %v117 = vld [vmem:[%s116] sm:%s4]
    %s118 = scalar_lea.vmem [#allocation0], 176
    %119 = vst [vmem:[%s118] sm:%s4] %v117
    %s120 = smul.addr 4, 21
    %s121 = scalar_lea.vmem %s0, %s120
    %v122 = vld [vmem:[%s121] sm:%s4]
    %s123 = scalar_lea.vmem [#allocation0], 168
    %124 = vst [vmem:[%s123] sm:%s4] %v122
    %s125 = smul.addr 4, 20
    %s126 = scalar_lea.vmem %s0, %s125
    %v127 = vld [vmem:[%s126] sm:%s4]
    %s128 = scalar_lea.vmem [#allocation0], 160
    %129 = vst [vmem:[%s128] sm:%s4] %v127
    %s130 = smul.addr 4, 19
    %s131 = scalar_lea.vmem %s0, %s130
    %v132 = vld [vmem:[%s131] sm:%s4]
    %s133 = scalar_lea.vmem [#allocation0], 152
    %134 = vst [vmem:[%s133] sm:%s4] %v132
    %s135 = smul.addr 4, 18
    %s136 = scalar_lea.vmem %s0, %s135
    %v137 = vld [vmem:[%s136] sm:%s4]
    %s138 = scalar_lea.vmem [#allocation0], 144
    %139 = vst [vmem:[%s138] sm:%s4] %v137
    %s140 = smul.addr 4, 17
    %s141 = scalar_lea.vmem %s0, %s140
    %v142 = vld [vmem:[%s141] sm:%s4]
    %s143 = scalar_lea.vmem [#allocation0], 136
    %144 = vst [vmem:[%s143] sm:%s4] %v142
    %s145 = smul.addr 4, 16
    %s146 = scalar_lea.vmem %s0, %s145
    %v147 = vld [vmem:[%s146] sm:%s4]
    %s148 = scalar_lea.vmem [#allocation0], 128
    %149 = vst [vmem:[%s148] sm:%s4] %v147
    %s150 = smul.addr 4, 15
    %s151 = scalar_lea.vmem %s0, %s150
    %v152 = vld [vmem:[%s151] sm:%s4]
    %s153 = scalar_lea.vmem [#allocation0], 120
    %154 = vst [vmem:[%s153] sm:%s4] %v152
    %s155 = smul.addr 4, 14
    %s156 = scalar_lea.vmem %s0, %s155
    %v157 = vld [vmem:[%s156] sm:%s4]
    %s158 = scalar_lea.vmem [#allocation0], 112
    %159 = vst [vmem:[%s158] sm:%s4] %v157
    %s160 = smul.addr 4, 13
    %s161 = scalar_lea.vmem %s0, %s160
    %v162 = vld [vmem:[%s161] sm:%s4]
    %s163 = scalar_lea.vmem [#allocation0], 104
    %164 = vst [vmem:[%s163] sm:%s4] %v162
    %s165 = smul.addr 4, 12
    %s166 = scalar_lea.vmem %s0, %s165
    %v167 = vld [vmem:[%s166] sm:%s4]
    %s168 = scalar_lea.vmem [#allocation0], 96
    %169 = vst [vmem:[%s168] sm:%s4] %v167
    %s170 = smul.addr 4, 11
    %s171 = scalar_lea.vmem %s0, %s170
    %v172 = vld [vmem:[%s171] sm:%s4]
    %s173 = scalar_lea.vmem [#allocation0], 88
    %174 = vst [vmem:[%s173] sm:%s4] %v172
    %s175 = smul.addr 4, 10
    %s176 = scalar_lea.vmem %s0, %s175
    %v177 = vld [vmem:[%s176] sm:%s4]
    %s178 = scalar_lea.vmem [#allocation0], 80
    %179 = vst [vmem:[%s178] sm:%s4] %v177
    %s180 = smul.addr 4, 9
    %s181 = scalar_lea.vmem %s0, %s180
    %v182 = vld [vmem:[%s181] sm:%s4]
    %s183 = scalar_lea.vmem [#allocation0], 72
    %184 = vst [vmem:[%s183] sm:%s4] %v182
    %s185 = smul.addr 4, 8
    %s186 = scalar_lea.vmem %s0, %s185
    %v187 = vld [vmem:[%s186] sm:%s4]
    %s188 = scalar_lea.vmem [#allocation0], 64
    %189 = vst [vmem:[%s188] sm:%s4] %v187
    %s190 = smul.addr 4, 7
    %s191 = scalar_lea.vmem %s0, %s190
    %v192 = vld [vmem:[%s191] sm:%s4]
    %s193 = scalar_lea.vmem [#allocation0], 56
    %194 = vst [vmem:[%s193] sm:%s4] %v192
    %s195 = smul.addr 4, 6
    %s196 = scalar_lea.vmem %s0, %s195
    %v197 = vld [vmem:[%s196] sm:%s4]
    %s198 = scalar_lea.vmem [#allocation0], 48
    %199 = vst [vmem:[%s198] sm:%s4] %v197
    %s200 = smul.addr 4, 5
    %s201 = scalar_lea.vmem %s0, %s200
    %v202 = vld [vmem:[%s201] sm:%s4]
    %s203 = scalar_lea.vmem [#allocation0], 40
    %204 = vst [vmem:[%s203] sm:%s4] %v202
    %s205 = smul.addr 4, 4
    %s206 = scalar_lea.vmem %s0, %s205
    %v207 = vld [vmem:[%s206] sm:%s4]
    %s208 = scalar_lea.vmem [#allocation0], 32
    %209 = vst [vmem:[%s208] sm:%s4] %v207
    %s210 = smul.addr 4, 3
    %s211 = scalar_lea.vmem %s0, %s210
    %v212 = vld [vmem:[%s211] sm:%s4]
    %s213 = scalar_lea.vmem [#allocation0], 24
    %214 = vst [vmem:[%s213] sm:%s4] %v212
    %s215 = smul.addr 4, 2
    %s216 = scalar_lea.vmem %s0, %s215
    %v217 = vld [vmem:[%s216] sm:%s4]
    %s218 = scalar_lea.vmem [#allocation0], 16
    %219 = vst [vmem:[%s218] sm:%s4] %v217
    %s220 = scalar_lea.vmem %s0, 4
    %v221 = vld [vmem:[%s220] sm:%s4]
    %s222 = scalar_lea.vmem [#allocation0], 8
    %223 = vst [vmem:[%s222] sm:%s4] %v221
    %v224 = vld [vmem:[%s0] sm:%s4]
    %225 = vst [vmem:[#allocation0] sm:%s4] %v224
    %s226 = smov 3
    %v227 = vld [vmem:[#allocation0] ss:$2 sm:%s226]
    %vm228 = vcmask 523264
    %229 = vst.msk [vmem:[%s1] ss:$8 sm:$0x3] %vm228, %v227
    %s230 = scalar_lea.vmem [#allocation0], 8
    %s231 = smov 3
    %v232 = vld [vmem:[%s230] ss:$2 sm:%s231]
    %vm233 = vcmask 523264
    %s234 = scalar_lea.vmem %s1, 1
    %235 = vst.msk [vmem:[%s234] ss:$8 sm:$0x3] %vm233, %v232
    %s236 = scalar_lea.vmem [#allocation0], 16
    %s237 = smov 3
    %v238 = vld [vmem:[%s236] ss:$2 sm:%s237]
    %vm239 = vcmask 523264
    %s240 = scalar_lea.vmem %s1, 2
    %241 = vst.msk [vmem:[%s240] ss:$8 sm:$0x3] %vm239, %v238
    %s242 = scalar_lea.vmem [#allocation0], 24
    %s243 = smov 3
    %v244 = vld [vmem:[%s242] ss:$2 sm:%s243]
    %vm245 = vcmask 523264
    %s246 = scalar_lea.vmem %s1, 3
    %247 = vst.msk [vmem:[%s246] ss:$8 sm:$0x3] %vm245, %v244
    %s248 = scalar_lea.vmem [#allocation0], 32
    %s249 = smov 3
    %v250 = vld [vmem:[%s248] ss:$2 sm:%s249]
    %vm251 = vcmask 523264
    %s252 = scalar_lea.vmem %s1, 4
    %253 = vst.msk [vmem:[%s252] ss:$8 sm:$0x3] %vm251, %v250
    %s254 = scalar_lea.vmem [#allocation0], 40
    %s255 = smov 3
    %v256 = vld [vmem:[%s254] ss:$2 sm:%s255]
    %vm257 = vcmask 523264
    %s258 = scalar_lea.vmem %s1, 5
    %259 = vst.msk [vmem:[%s258] ss:$8 sm:$0x3] %vm257, %v256
    %s260 = scalar_lea.vmem [#allocation0], 48
    %s261 = smov 3
    %v262 = vld [vmem:[%s260] ss:$2 sm:%s261]
    %vm263 = vcmask 523264
    %s264 = scalar_lea.vmem %s1, 6
    %265 = vst.msk [vmem:[%s264] ss:$8 sm:$0x3] %vm263, %v262
    %s266 = scalar_lea.vmem [#allocation0], 56
    %s267 = smov 3
    %v268 = vld [vmem:[%s266] ss:$2 sm:%s267]
    %vm269 = vcmask 523264
    %s270 = scalar_lea.vmem %s1, 7
    %271 = vst.msk [vmem:[%s270] ss:$8 sm:$0x3] %vm269, %v268
    %s272 = scalar_lea.vmem [#allocation0], 64
    %s273 = smov 3
    %v274 = vld [vmem:[%s272] ss:$2 sm:%s273]
    %vm275 = vcmask 523264
    %s276 = scalar_lea.vmem %s1, 16
    %277 = vst.msk [vmem:[%s276] ss:$8 sm:$0x3] %vm275, %v274
    %s278 = scalar_lea.vmem [#allocation0], 72
    %s279 = smov 3
    %v280 = vld [vmem:[%s278] ss:$2 sm:%s279]
    %vm281 = vcmask 523264
    %s282 = scalar_lea.vmem %s1, 17
    %283 = vst.msk [vmem:[%s282] ss:$8 sm:$0x3] %vm281, %v280
    %s284 = scalar_lea.vmem [#allocation0], 80
    %s285 = smov 3
    %v286 = vld [vmem:[%s284] ss:$2 sm:%s285]
    %vm287 = vcmask 523264
    %s288 = scalar_lea.vmem %s1, 18
    %289 = vst.msk [vmem:[%s288] ss:$8 sm:$0x3] %vm287, %v286
    %s290 = scalar_lea.vmem [#allocation0], 88
    %s291 = smov 3
    %v292 = vld [vmem:[%s290] ss:$2 sm:%s291]
    %vm293 = vcmask 523264
    %s294 = scalar_lea.vmem %s1, 19
    %295 = vst.msk [vmem:[%s294] ss:$8 sm:$0x3] %vm293, %v292
    %s296 = scalar_lea.vmem [#allocation0], 96
    %s297 = smov 3
    %v298 = vld [vmem:[%s296] ss:$2 sm:%s297]
    %vm299 = vcmask 523264
    %s300 = scalar_lea.vmem %s1, 20
    %301 = vst.msk [vmem:[%s300] ss:$8 sm:$0x3] %vm299, %v298
    %s302 = scalar_lea.vmem [#allocation0], 104
    %s303 = smov 3
    %v304 = vld [vmem:[%s302] ss:$2 sm:%s303]
    %vm305 = vcmask 523264
    %s306 = scalar_lea.vmem %s1, 21
    %307 = vst.msk [vmem:[%s306] ss:$8 sm:$0x3] %vm305, %v304
    %s308 = scalar_lea.vmem [#allocation0], 112
    %s309 = smov 3
    %v310 = vld [vmem:[%s308] ss:$2 sm:%s309]
    %vm311 = vcmask 523264
    %s312 = scalar_lea.vmem %s1, 22
    %313 = vst.msk [vmem:[%s312] ss:$8 sm:$0x3] %vm311, %v310
    %s314 = scalar_lea.vmem [#allocation0], 120
    %s315 = smov 3
    %v316 = vld [vmem:[%s314] ss:$2 sm:%s315]
    %vm317 = vcmask 523264
    %s318 = scalar_lea.vmem %s1, 23
    %319 = vst.msk [vmem:[%s318] ss:$8 sm:$0x3] %vm317, %v316
    %s320 = scalar_lea.vmem [#allocation0], 128
    %s321 = smov 3
    %v322 = vld [vmem:[%s320] ss:$2 sm:%s321]
    %vm323 = vcmask 523264
    %s324 = scalar_lea.vmem %s1, 32
    %325 = vst.msk [vmem:[%s324] ss:$8 sm:$0x3] %vm323, %v322
    %s326 = scalar_lea.vmem [#allocation0], 136
    %s327 = smov 3
    %v328 = vld [vmem:[%s326] ss:$2 sm:%s327]
    %vm329 = vcmask 523264
    %s330 = scalar_lea.vmem %s1, 33
    %331 = vst.msk [vmem:[%s330] ss:$8 sm:$0x3] %vm329, %v328
    %s332 = scalar_lea.vmem [#allocation0], 144
    %s333 = smov 3
    %v334 = vld [vmem:[%s332] ss:$2 sm:%s333]
    %vm335 = vcmask 523264
    %s336 = scalar_lea.vmem %s1, 34
    %337 = vst.msk [vmem:[%s336] ss:$8 sm:$0x3] %vm335, %v334
    %s338 = scalar_lea.vmem [#allocation0], 152
    %s339 = smov 3
    %v340 = vld [vmem:[%s338] ss:$2 sm:%s339]
    %vm341 = vcmask 523264
    %s342 = scalar_lea.vmem %s1, 35
    %343 = vst.msk [vmem:[%s342] ss:$8 sm:$0x3] %vm341, %v340
    %s344 = scalar_lea.vmem [#allocation0], 160
    %s345 = smov 3
    %v346 = vld [vmem:[%s344] ss:$2 sm:%s345]
    %vm347 = vcmask 523264
    %s348 = scalar_lea.vmem %s1, 36
    %349 = vst.msk [vmem:[%s348] ss:$8 sm:$0x3] %vm347, %v346
    %s350 = scalar_lea.vmem [#allocation0], 168
    %s351 = smov 3
    %v352 = vld [vmem:[%s350] ss:$2 sm:%s351]
    %vm353 = vcmask 523264
    %s354 = scalar_lea.vmem %s1, 37
    %355 = vst.msk [vmem:[%s354] ss:$8 sm:$0x3] %vm353, %v352
    %s356 = scalar_lea.vmem [#allocation0], 176
    %s357 = smov 3
    %v358 = vld [vmem:[%s356] ss:$2 sm:%s357]
    %vm359 = vcmask 523264
    %s360 = scalar_lea.vmem %s1, 38
    %361 = vst.msk [vmem:[%s360] ss:$8 sm:$0x3] %vm359, %v358
    %s362 = scalar_lea.vmem [#allocation0], 184
    %s363 = smov 3
    %v364 = vld [vmem:[%s362] ss:$2 sm:%s363]
    %vm365 = vcmask 523264
    %s366 = scalar_lea.vmem %s1, 39
    %367 = vst.msk [vmem:[%s366] ss:$8 sm:$0x3] %vm365, %v364
    %s368 = scalar_lea.vmem [#allocation0], 192
    %s369 = smov 3
    %v370 = vld [vmem:[%s368] ss:$2 sm:%s369]
    %vm371 = vcmask 523264
    %s372 = scalar_lea.vmem %s1, 48
    %373 = vst.msk [vmem:[%s372] ss:$8 sm:$0x3] %vm371, %v370
    %s374 = scalar_lea.vmem [#allocation0], 200
    %s375 = smov 3
    %v376 = vld [vmem:[%s374] ss:$2 sm:%s375]
    %vm377 = vcmask 523264
    %s378 = scalar_lea.vmem %s1, 49
    %379 = vst.msk [vmem:[%s378] ss:$8 sm:$0x3] %vm377, %v376
    %s380 = scalar_lea.vmem [#allocation0], 208
    %s381 = smov 3
    %v382 = vld [vmem:[%s380] ss:$2 sm:%s381]
    %vm383 = vcmask 523264
    %s384 = scalar_lea.vmem %s1, 50
    %385 = vst.msk [vmem:[%s384] ss:$8 sm:$0x3] %vm383, %v382
    %s386 = scalar_lea.vmem [#allocation0], 216
    %s387 = smov 3
    %v388 = vld [vmem:[%s386] ss:$2 sm:%s387]
    %vm389 = vcmask 523264
    %s390 = scalar_lea.vmem %s1, 51
    %391 = vst.msk [vmem:[%s390] ss:$8 sm:$0x3] %vm389, %v388
    %s392 = scalar_lea.vmem [#allocation0], 224
    %s393 = smov 3
    %v394 = vld [vmem:[%s392] ss:$2 sm:%s393]
    %vm395 = vcmask 523264
    %s396 = scalar_lea.vmem %s1, 52
    %397 = vst.msk [vmem:[%s396] ss:$8 sm:$0x3] %vm395, %v394
    %s398 = scalar_lea.vmem [#allocation0], 232
    %s399 = smov 3
    %v400 = vld [vmem:[%s398] ss:$2 sm:%s399]
    %vm401 = vcmask 523264
    %s402 = scalar_lea.vmem %s1, 53
    %403 = vst.msk [vmem:[%s402] ss:$8 sm:$0x3] %vm401, %v400
    %s404 = scalar_lea.vmem [#allocation0], 240
    %s405 = smov 3
    %v406 = vld [vmem:[%s404] ss:$2 sm:%s405]
    %vm407 = vcmask 523264
    %s408 = scalar_lea.vmem %s1, 54
    %409 = vst.msk [vmem:[%s408] ss:$8 sm:$0x3] %vm407, %v406
    %s410 = scalar_lea.vmem [#allocation0], 248
    %s411 = smov 3
    %v412 = vld [vmem:[%s410] ss:$2 sm:%s411]
    %vm413 = vcmask 523264
    %s414 = scalar_lea.vmem %s1, 55
    %415 = vst.msk [vmem:[%s414] ss:$8 sm:$0x3] %vm413, %v412
    %s416 = scalar_lea.vmem [#allocation0], 256
    %s417 = smov 3
    %v418 = vld [vmem:[%s416] ss:$2 sm:%s417]
    %vm419 = vcmask 523264
    %s420 = scalar_lea.vmem %s1, 64
    %421 = vst.msk [vmem:[%s420] ss:$8 sm:$0x3] %vm419, %v418
    %s422 = scalar_lea.vmem [#allocation0], 264
    %s423 = smov 3
    %v424 = vld [vmem:[%s422] ss:$2 sm:%s423]
    %vm425 = vcmask 523264
    %s426 = scalar_lea.vmem %s1, 65
    %427 = vst.msk [vmem:[%s426] ss:$8 sm:$0x3] %vm425, %v424
    %s428 = scalar_lea.vmem [#allocation0], 272
    %s429 = smov 3
    %v430 = vld [vmem:[%s428] ss:$2 sm:%s429]
    %vm431 = vcmask 523264
    %s432 = scalar_lea.vmem %s1, 66
    %433 = vst.msk [vmem:[%s432] ss:$8 sm:$0x3] %vm431, %v430
    %s434 = scalar_lea.vmem [#allocation0], 280
    %s435 = smov 3
    %v436 = vld [vmem:[%s434] ss:$2 sm:%s435]
    %vm437 = vcmask 523264
    %s438 = scalar_lea.vmem %s1, 67
    %439 = vst.msk [vmem:[%s438] ss:$8 sm:$0x3] %vm437, %v436
    %s440 = scalar_lea.vmem [#allocation0], 288
    %s441 = smov 3
    %v442 = vld [vmem:[%s440] ss:$2 sm:%s441]
    %vm443 = vcmask 523264
    %s444 = scalar_lea.vmem %s1, 68
    %445 = vst.msk [vmem:[%s444] ss:$8 sm:$0x3] %vm443, %v442
    %s446 = scalar_lea.vmem [#allocation0], 296
    %s447 = smov 3
    %v448 = vld [vmem:[%s446] ss:$2 sm:%s447]
    %vm449 = vcmask 523264
    %s450 = scalar_lea.vmem %s1, 69
    %451 = vst.msk [vmem:[%s450] ss:$8 sm:$0x3] %vm449, %v448
    %s452 = scalar_lea.vmem [#allocation0], 304
    %s453 = smov 3
    %v454 = vld [vmem:[%s452] ss:$2 sm:%s453]
    %vm455 = vcmask 523264
    %s456 = scalar_lea.vmem %s1, 70
    %457 = vst.msk [vmem:[%s456] ss:$8 sm:$0x3] %vm455, %v454
    %s458 = scalar_lea.vmem [#allocation0], 312
    %s459 = smov 3
    %v460 = vld [vmem:[%s458] ss:$2 sm:%s459]
    %vm461 = vcmask 523264
    %s462 = scalar_lea.vmem %s1, 71
    %463 = vst.msk [vmem:[%s462] ss:$8 sm:$0x3] %vm461, %v460
    %s464 = scalar_lea.vmem [#allocation0], 320
    %s465 = smov 3
    %v466 = vld [vmem:[%s464] ss:$2 sm:%s465]
    %vm467 = vcmask 523264
    %s468 = scalar_lea.vmem %s1, 80
    %469 = vst.msk [vmem:[%s468] ss:$8 sm:$0x3] %vm467, %v466
    %s470 = scalar_lea.vmem [#allocation0], 328
    %s471 = smov 3
    %v472 = vld [vmem:[%s470] ss:$2 sm:%s471]
    %vm473 = vcmask 523264
    %s474 = scalar_lea.vmem %s1, 81
    %475 = vst.msk [vmem:[%s474] ss:$8 sm:$0x3] %vm473, %v472
    %s476 = scalar_lea.vmem [#allocation0], 336
    %s477 = smov 3
    %v478 = vld [vmem:[%s476] ss:$2 sm:%s477]
    %vm479 = vcmask 523264
    %s480 = scalar_lea.vmem %s1, 82
    %481 = vst.msk [vmem:[%s480] ss:$8 sm:$0x3] %vm479, %v478
    %s482 = scalar_lea.vmem [#allocation0], 344
    %s483 = smov 3
    %v484 = vld [vmem:[%s482] ss:$2 sm:%s483]
    %vm485 = vcmask 523264
    %s486 = scalar_lea.vmem %s1, 83
    %487 = vst.msk [vmem:[%s486] ss:$8 sm:$0x3] %vm485, %v484
    %s488 = scalar_lea.vmem [#allocation0], 352
    %s489 = smov 3
    %v490 = vld [vmem:[%s488] ss:$2 sm:%s489]
    %vm491 = vcmask 523264
    %s492 = scalar_lea.vmem %s1, 84
    %493 = vst.msk [vmem:[%s492] ss:$8 sm:$0x3] %vm491, %v490
    %s494 = scalar_lea.vmem [#allocation0], 1
    %v495 = vld [vmem:[%s494] ss:$8 sm:$0xf]
    %s496 = scalar_lea.vmem [#allocation0], 1
    %v497 = vld [vmem:[%s496] ss:$8 sm:$0xf0]
    %vm498 = vcmask 1047556
    %v499 = vsel %vm498, %v497, %v495
    %500 = vrot.lane.b32.xlu0 %v499, 64
    %v501 = vpop.permute.xlu0 %500
    %vm502 = vcmask 1048064
    %503 = vst.msk [vmem:[%s1] sm:$0xff] %vm502, %v501
    %s504 = scalar_lea.vmem [#allocation0], 129
    %v505 = vld [vmem:[%s504] ss:$8 sm:$0xf]
    %s506 = scalar_lea.vmem [#allocation0], 129
    %v507 = vld [vmem:[%s506] ss:$8 sm:$0xf0]
    %vm508 = vcmask 1047556
    %v509 = vsel %vm508, %v507, %v505
    %510 = vrot.lane.b32.xlu0 %v509, 64
    %v511 = vpop.permute.xlu0 %510
    %vm512 = vcmask 1048064
    %s513 = scalar_lea.vmem %s1, 32
    %514 = vst.msk [vmem:[%s513] sm:$0xff] %vm512, %v511
    %s515 = scalar_lea.vmem [#allocation0], 257
    %v516 = vld [vmem:[%s515] ss:$8 sm:$0xf]
    %s517 = scalar_lea.vmem [#allocation0], 257
    %v518 = vld [vmem:[%s517] ss:$8 sm:$0xf0]
    %vm519 = vcmask 1047556
    %v520 = vsel %vm519, %v518, %v516
    %521 = vrot.lane.b32.xlu0 %v520, 64
    %v522 = vpop.permute.xlu0 %521
    %vm523 = vcmask 1048064
    %s524 = scalar_lea.vmem %s1, 64
    %525 = vst.msk [vmem:[%s524] sm:$0xff] %vm523, %v522
    %s526 = scalar_lea.vmem [#allocation0], 3
    %v527 = vld [vmem:[%s526] ss:$8 sm:$0xf]
    %s528 = scalar_lea.vmem [#allocation0], 3
    %v529 = vld [vmem:[%s528] ss:$8 sm:$0xf0]
    %vm530 = vcmask 1047556
    %v531 = vsel %vm530, %v529, %v527
    %532 = vrot.lane.b32.xlu0 %v531, 64
    %v533 = vpop.permute.xlu0 %532
    %vm534 = vcmask 1048064
    %s535 = scalar_lea.vmem %s1, 8
    %536 = vst.msk [vmem:[%s535] sm:$0xff] %vm534, %v533
    %s537 = scalar_lea.vmem [#allocation0], 131
    %v538 = vld [vmem:[%s537] ss:$8 sm:$0xf]
    %s539 = scalar_lea.vmem [#allocation0], 131
    %v540 = vld [vmem:[%s539] ss:$8 sm:$0xf0]
    %vm541 = vcmask 1047556
    %v542 = vsel %vm541, %v540, %v538
    %543 = vrot.lane.b32.xlu0 %v542, 64
    %v544 = vpop.permute.xlu0 %543
    %vm545 = vcmask 1048064
    %s546 = scalar_lea.vmem %s1, 40
    %547 = vst.msk [vmem:[%s546] sm:$0xff] %vm545, %v544
    %s548 = scalar_lea.vmem [#allocation0], 259
    %v549 = vld [vmem:[%s548] ss:$8 sm:$0xf]
    %s550 = scalar_lea.vmem [#allocation0], 259
    %v551 = vld [vmem:[%s550] ss:$8 sm:$0xf0]
    %vm552 = vcmask 1047556
    %v553 = vsel %vm552, %v551, %v549
    %554 = vrot.lane.b32.xlu0 %v553, 64
    %v555 = vpop.permute.xlu0 %554
    %vm556 = vcmask 1048064
    %s557 = scalar_lea.vmem %s1, 72
    %558 = vst.msk [vmem:[%s557] sm:$0xff] %vm556, %v555
    %s559 = scalar_lea.vmem [#allocation0], 65
    %v560 = vld [vmem:[%s559] ss:$8 sm:$0xf]
    %s561 = scalar_lea.vmem [#allocation0], 65
    %v562 = vld [vmem:[%s561] ss:$8 sm:$0xf0]
    %vm563 = vcmask 1047556
    %v564 = vsel %vm563, %v562, %v560
    %565 = vrot.lane.b32.xlu0 %v564, 64
    %v566 = vpop.permute.xlu0 %565
    %vm567 = vcmask 1048064
    %s568 = scalar_lea.vmem %s1, 16
    %569 = vst.msk [vmem:[%s568] sm:$0xff] %vm567, %v566
    %s570 = scalar_lea.vmem [#allocation0], 193
    %v571 = vld [vmem:[%s570] ss:$8 sm:$0xf]
    %s572 = scalar_lea.vmem [#allocation0], 193
    %v573 = vld [vmem:[%s572] ss:$8 sm:$0xf0]
    %vm574 = vcmask 1047556
    %v575 = vsel %vm574, %v573, %v571
    %576 = vrot.lane.b32.xlu0 %v575, 64
    %v577 = vpop.permute.xlu0 %576
    %vm578 = vcmask 1048064
    %s579 = scalar_lea.vmem %s1, 48
    %580 = vst.msk [vmem:[%s579] sm:$0xff] %vm578, %v577
    %s581 = scalar_lea.vmem [#allocation0], 321
    %v582 = vld [vmem:[%s581] ss:$8 sm:$0xf]
    %s583 = scalar_lea.vmem [#allocation0], 1497
    %s584 = smov 48
    %v585 = vld [vmem:[%s583] ss:$-286 sm:%s584]
    %vm586 = vcmask 1045508
    %v587 = vsel %vm586, %v585, %v582
    %s588 = scalar_lea.vmem [#allocation0], 27
    %s589 = smov 192
    %v590 = vld [vmem:[%s588] ss:$8 sm:%s589]
    %vm591 = vcmask 1047558
    %v592 = vsel %vm591, %v590, %v587
    %593 = vrot.lane.b32.xlu0 %v592, 64
    %v594 = vpop.permute.xlu0 %593
    %vm595 = vcmask 1048064
    %s596 = scalar_lea.vmem %s1, 80
    %597 = vst.msk [vmem:[%s596] sm:$0x1f] %vm595, %v594
    %s598 = scalar_lea.vmem %s1, 19
    %599 = vst.msk [vmem:[%s598] sm:$0xe0] %vm595, %v594
    %s600 = scalar_lea.vmem [#allocation0], 195
    %v601 = vld [vmem:[%s600] ss:$8 sm:$0x7]
    %s602 = scalar_lea.vmem [#allocation0], 67
    %v603 = vld [vmem:[%s602] ss:$8 sm:$0x78]
    %vm604 = vcmask 1046531
    %v605 = vsel %vm604, %v603, %v601
    %s606 = scalar_lea.vmem [#allocation0], 116
    %v607 = vld [vmem:[%s606] sm:$0x80]
    %vm608 = vcmask 1047559
    %v609 = vsel %vm608, %v607, %v605
    %610 = vrot.lane.b32.xlu0 %v609, 64
    %v611 = vpop.permute.xlu0 %610
    %vm612 = vcmask 1048064
    %s613 = scalar_lea.vmem %s1, 56
    %614 = vst.msk [vmem:[%s613] sm:$0x7] %vm612, %v611
    %s615 = scalar_lea.vmem %s1, 24
    %616 = vst.msk [vmem:[%s615] sm:$0xf8] %vm612, %v611
    %s617 = scalar_lea.vmem [#allocation0], 323
    %v618 = vld [vmem:[%s617] ss:$8 sm:$0x7]
    %s619 = scalar_lea.vmem [#allocation0], 195
    %v620 = vld [vmem:[%s619] ss:$8 sm:$0x78]
    %vm621 = vcmask 1046531
    %v622 = vsel %vm621, %v620, %v618
    %s623 = scalar_lea.vmem [#allocation0], 244
    %v624 = vld [vmem:[%s623] sm:$0x80]
    %vm625 = vcmask 1047559
    %v626 = vsel %vm625, %v624, %v622
    %627 = vrot.lane.b32.xlu0 %v626, 64
    %v628 = vpop.permute.xlu0 %627
    %vm629 = vcmask 1048064
    %s630 = scalar_lea.vmem %s1, 88
    %631 = vst.msk [vmem:[%s630] sm:$0x7] %vm629, %v628
    %s632 = scalar_lea.vmem %s1, 56
    %633 = vst.msk [vmem:[%s632] sm:$0xf8] %vm629, %v628
    %s634 = scalar_lea.vmem [#allocation0], 347
    %s635 = smov 3
    %v636 = vld [vmem:[%s634] ss:$8 sm:%s635]
    %637 = vrot.lane.b32.xlu0 %v636, 64
    %v638 = vpop.permute.xlu0 %637
    %vm639 = vcmask 1048064
    %s640 = scalar_lea.vmem %s1, 91
    %641 = vst.msk [vmem:[%s640] sm:$0x3] %vm639, %v638

// kernel: tile.19
$region0: #{tile.19}
  %s0 = inlined_call_operand.vmem [shape: f32[2,4,64], index: 0, kind: input, shape index: {}]
  %s1 = inlined_call_operand.vmem [shape: f32[2,256], index: 1, kind: output, shape index: {}]
  $region1: #{tile.19} parent=0
    #allocation0 [shape = 'u8[8192]{0}', space=vmem, size = 0x2000, scoped, tag = 'scoped mem for output reshape']
    #allocation1 [shape = 'u8[8192]{0}', space=vmem, size = 0x2000, scoped, tag = 'scoped mem for input reshape']
    %s3 = sshll.u32 1, 4
    %s4 = ssub.s32 %s3, 1
    %s5 = scalar_lea.vmem %s0, 4
    %v6 = vld [vmem:[%s5] sm:%s4]
    %s7 = scalar_lea.vmem [#allocation1], 8
    %8 = vst [vmem:[%s7] sm:%s4] %v6
    %v9 = vld [vmem:[%s0] sm:%s4]
    %10 = vst [vmem:[#allocation1] sm:%s4] %v9
    %s11 = smov 3
    %v12 = vld [vmem:[#allocation1] ss:$2 sm:%s11]
    %vm13 = vcmask 523264
    %14 = vst.msk [vmem:[#allocation0] ss:$8 sm:$0x3] %vm13, %v12
    %s15 = scalar_lea.vmem [#allocation1], 8
    %s16 = smov 3
    %v17 = vld [vmem:[%s15] ss:$2 sm:%s16]
    %vm18 = vcmask 523264
    %s19 = scalar_lea.vmem [#allocation0], 1
    %20 = vst.msk [vmem:[%s19] ss:$8 sm:$0x3] %vm18, %v17
    %s21 = scalar_lea.vmem [#allocation1], 1
    %v22 = vld.sshfl [vmem:[%s21] sm:$0xff pattern:$0xaaaaa280]
    %23 = vrot.lane.b32.xlu0 %v22, 64
    %v24 = vpop.permute.xlu0 %23
    %vm25 = vcmask 1048064
    %26 = vst.msk [vmem:[#allocation0] sm:$0x3] %vm25, %v24
    %s27 = scalar_lea.vmem [#allocation0], 6
    %28 = vst.msk [vmem:[%s27] sm:$0xc] %vm25, %v24
    %s30 = sshll.u32 1, 2
    %s31 = ssub.s32 %s30, 1
    %v33 = vld [vmem:[#allocation0] sm:%s31]
    %s34 = sshll.u32 1, 2
    %s35 = ssub.s32 %s34, 1
    %36 = vst [vmem:[%s1] sm:%s35] %v33
    %s37 = scalar_lea.vmem [#allocation0], 8
    %v38 = vld [vmem:[%s37] sm:%s31]
    %s39 = sshll.u32 1, 2
    %s40 = ssub.s32 %s39, 1
    %s41 = scalar_lea.vmem %s1, 2
    %42 = vst [vmem:[%s41] sm:%s40] %v38

// kernel: mra_forward.1
$region0: #{mra_forward.1}
  #allocation0 [shape = 'u32[]', space=smem, size = 0x4, offset = 0x4, fixed_abs, tag = 'smem constant byte address 0x4 - core index']
  #allocation1 [shape = 'u32[144,128]{1,0:T(1,128)}', space=vmem, size = 0x12000, scoped, tag = 'internal scratch']
  %s0 = inlined_call_operand.vmem [shape: f32[2,12,768], index: 0, kind: input, shape index: {}]
  %s1 = inlined_call_operand.vmem [shape: f32[45,256], index: 1, kind: input, shape index: {}]
  %s2 = inlined_call_operand.vmem [shape: f32[2,256], index: 2, kind: input, shape index: {}]
  %s3 = inlined_call_operand.vmem [shape: f32[2,12,768], index: 3, kind: output, shape index: {}]
  %s4 = sld [smem:[#allocation0]]
  $region45: #{mra_forward.1} parent=0
    _
  %s6 = ssub.s32 1, %s4
  %s7 = scalar_select 0, %s6, %s4
  loop: start=0, step=1, limit=4
  $region2: #{mra_forward.1} parent=0 // loop_pre_header
    _
  $region3: #{mra_forward.1} parent=0 // loop_header
    %s9 = sphi 0, %s13
    %p10 = scmp.ge.s32.totalorder %s9, 4
    %s19 = sphi 0, %s21
    %s22 = sphi 0, %s19
    %s23 = sphi 0, %s22
    %s39 = sphi 0, %s23
    %s43 = sphi 0, %s43
    %s45 = sphi 0, %s43
    %s46 = sphi 0, %s45
    %s60 = sphi 0, %s46
    %s64 = sphi 0, %s64
    %s66 = sphi 0, %s64
    %s67 = sphi 0, %s66
    %s81 = sphi 0, %s67
    %s87 = sphi 0, %s89
    %s90 = sphi 0, %s87
    %s91 = sphi 0, %s90
    %s107 = sphi 0, %s91
  $region4: #{mra_forward.1} parent=0 // loop_header_branch
    %12 = sbr.rel (%p10) target = $region8
  $region5: #{mra_forward.1} parent=0 // loop_body
    %s14 = ssub.s32 %s9, 1
    %s15 = ssub.s32 %s9, 2
    %s16 = sadd.s32 %s9, 1
    %s17 = ssub.s32 %s9, %s16
    %p18 = scmp.eq.s32.totalorder %s17, 0
    %s20 = sadd.s32 %s19, 1
    %s21 = scalar_select %p18, %s19, %s20
    %p24 = pneg %p18
    %p25 = scmp.eq.s32.totalorder %s9, 1
    %p26 = por %p24, %p25
    %p27 = scmp.ne.s32.totalorder %s19, %s22
    %p28 = scmp.eq.s32.totalorder %s9, 0
    %p29 = por %p27, %p28
    %p30 = scmp.ne.s32.totalorder %s19, %s22
    %p31 = scmp.eq.s32.totalorder %s14, 1
    %p32 = por %p30, %p31
    %p33 = scmp.ne.s32.totalorder %s22, %s23
    %p34 = scmp.eq.s32.totalorder %s14, 0
    %p35 = por %p33, %p34
    %p36 = scmp.ne.s32.totalorder %s22, %s23
    %p37 = scmp.eq.s32.totalorder %s15, 1
    %p38 = por %p36, %p37
    %p40 = scmp.ne.s32.totalorder %s23, %s39
    %p41 = scmp.eq.s32.totalorder %s15, 0
    %p42 = por %p40, %p41
    %s44 = sadd.s32 %s43, 1
    %p47 = scmp.eq.s32.totalorder %s9, 1
    %p48 = scmp.ne.s32.totalorder %s43, %s45
    %p49 = scmp.eq.s32.totalorder %s9, 0
    %p50 = por %p48, %p49
    %p51 = scmp.ne.s32.totalorder %s43, %s45
    %p52 = scmp.eq.s32.totalorder %s14, 1
    %p53 = por %p51, %p52
    %p54 = scmp.ne.s32.totalorder %s45, %s46
    %p55 = scmp.eq.s32.totalorder %s14, 0
    %p56 = por %p54, %p55
    %p57 = scmp.ne.s32.totalorder %s45, %s46
    %p58 = scmp.eq.s32.totalorder %s15, 1
    %p59 = por %p57, %p58
    %p61 = scmp.ne.s32.totalorder %s46, %s60
    %p62 = scmp.eq.s32.totalorder %s15, 0
    %p63 = por %p61, %p62
    %s65 = sadd.s32 %s64, 1
    %p68 = scmp.eq.s32.totalorder %s9, 1
    %p69 = scmp.ne.s32.totalorder %s64, %s66
    %p70 = scmp.eq.s32.totalorder %s9, 0
    %p71 = por %p69, %p70
    %p72 = scmp.ne.s32.totalorder %s64, %s66
    %p73 = scmp.eq.s32.totalorder %s14, 1
    %p74 = por %p72, %p73
    %p75 = scmp.ne.s32.totalorder %s66, %s67
    %p76 = scmp.eq.s32.totalorder %s14, 0
    %p77 = por %p75, %p76
    %p78 = scmp.ne.s32.totalorder %s66, %s67
    %p79 = scmp.eq.s32.totalorder %s15, 1
    %p80 = por %p78, %p79
    %p82 = scmp.ne.s32.totalorder %s67, %s81
    %p83 = scmp.eq.s32.totalorder %s15, 0
    %p84 = por %p82, %p83
    %s85 = ssub.s32 %s9, %s16
    %p86 = scmp.eq.s32.totalorder %s85, 0
    %s88 = sadd.s32 %s87, 1
    %s89 = scalar_select %p86, %s87, %s88
    %p92 = pneg %p86
    %p93 = scmp.eq.s32.totalorder %s9, 1
    %p94 = por %p92, %p93
    %p95 = scmp.ne.s32.totalorder %s87, %s90
    %p96 = scmp.eq.s32.totalorder %s9, 0
    %p97 = por %p95, %p96
    %p98 = scmp.ne.s32.totalorder %s87, %s90
    %p99 = scmp.eq.s32.totalorder %s14, 1
    %p100 = por %p98, %p99
    %p101 = scmp.ne.s32.totalorder %s90, %s91
    %p102 = scmp.eq.s32.totalorder %s14, 0
    %p103 = por %p101, %p102
    %p104 = scmp.ne.s32.totalorder %s90, %s91
    %p105 = scmp.eq.s32.totalorder %s15, 1
    %p106 = por %p104, %p105
    %p108 = scmp.ne.s32.totalorder %s91, %s107
    %p109 = scmp.eq.s32.totalorder %s15, 0
    %p110 = por %p108, %p109
    %p111 = scmp.le.s32.totalorder 1, %s9
    %p112 = scmp.lt.s32.totalorder %s9, 3
    %p113 = pnand %p111, %p112
    %p114 = pneg %p113
    // Predicated region
    $region9: #{mra_forward.1} parent=5 // pred_check
      _
    $region10: #{mra_forward.1} parent=5 // pred_check_branch
      %116 = sbr.rel (%p113) target = $region12
    $region11: #{mra_forward.1} parent=5 // pred_region
      %s117 = ssub.s32 %s9, 1
      // Predicated region
      $region13: #{mra_forward.1} parent=11 // pred_check
        %p118 = pneg %p56
      $region14: #{mra_forward.1} parent=11 // pred_check_branch
        %120 = sbr.rel (%p118) target = $region16
      $region15: #{mra_forward.1} parent=11 // pred_region
        _
      $region16: #{mra_forward.1} parent=11 // pred_fallthru
        _
      // Predicated region
      $region17: #{mra_forward.1} parent=11 // pred_check
        %p121 = pneg %p77
      $region18: #{mra_forward.1} parent=11 // pred_check_branch
        %123 = sbr.rel (%p121) target = $region20
      $region19: #{mra_forward.1} parent=11 // pred_region
        _
      $region20: #{mra_forward.1} parent=11 // pred_fallthru
        _
    $region12: #{mra_forward.1} parent=5 // pred_fallthru
      _
    %p124 = scmp.lt.s32.totalorder %s9, 2
    // Predicated region
    $region21: #{mra_forward.1} parent=5 // pred_check
      %p125 = pneg %p124
    $region22: #{mra_forward.1} parent=5 // pred_check_branch
      %127 = sbr.rel (%p125) target = $region24
    $region23: #{mra_forward.1} parent=5 // pred_region
      // Predicated region
      $region25: #{mra_forward.1} parent=23 // pred_check
        %p128 = pneg %p29
      $region26: #{mra_forward.1} parent=23 // pred_check_branch
        %130 = sbr.rel (%p128) target = $region28
      $region27: #{mra_forward.1} parent=23 // pred_region
        %p131 = scmp.lt.s32.totalorder %s9, 1
        %s132 = scalar_select %p131, %s9, 1
        %s133 = smul.addr %s132, 12
        %s134 = smul.addr %s133, 8
        %s135 = scalar_lea.vmem %s0, %s134
      $region28: #{mra_forward.1} parent=23 // pred_fallthru
        _
    $region24: #{mra_forward.1} parent=5 // pred_fallthru
      _
    %p136 = scmp.le.s32.totalorder 1, %s9
    %p137 = scmp.lt.s32.totalorder %s9, 3
    %p138 = pnand %p136, %p137
    %p139 = pneg %p138
    // Predicated region
    $region29: #{mra_forward.1} parent=5 // pred_check
      _
    $region30: #{mra_forward.1} parent=5 // pred_check_branch
      %141 = sbr.rel (%p138) target = $region32
    $region31: #{mra_forward.1} parent=5 // pred_region
      %s142 = ssub.s32 %s9, 1
      %p143 = scmp.lt.s32.totalorder %s14, 1
      %s144 = scalar_select %p143, %s14, 1
      %s145 = smul.addr %s144, 12
      %s146 = smul.addr %s145, 8
      %s147 = scalar_lea.vmem %s0, %s146
      %p148 = pneg %p35
      %p149 = pneg %p32
      %p150 = pneg %p56
      %p151 = pneg %p53
      %p152 = pneg %p77
      %p153 = pneg %p74
      %p154 = pneg %p103
      %p155 = pneg %p100
      %p156 = scmp.lt.s32.totalorder %s14, 1
      %s157 = scalar_select %p156, %s14, 1
      %s158 = smul.addr %s157, 12
      %s159 = smul.addr %s158, 8
      %s160 = scalar_lea.vmem %s3, %s159
      %p161 = scmp.lt.s32.totalorder %s14, 1
      %s162 = scalar_select %p161, %s14, 1
      %s163 = smul.addr %s162, 12
      %s164 = smul.addr %s163, 8
      %s165 = scalar_lea.vmem %s0, %s164
      %p166 = scmp.lt.s32.totalorder %s14, 1
      %s167 = scalar_select %p166, %s14, 1
      %s168 = smul.addr %s167, 12
      %s169 = smul.addr %s168, 8
      %s170 = scalar_lea.vmem %s3, %s169
      %v171 = vld [vmem:[%s165] sm:$0xff]
      %v172 = vld [vmem:[%s165 + $0x8] sm:$0xff]
      %v173 = vld [vmem:[%s165 + $0x10] sm:$0xff]
      %v174 = vld [vmem:[%s165 + $0x18] sm:$0xff]
      %v175 = vld [vmem:[%s165 + $0x20] sm:$0xff]
      %v176 = vld [vmem:[%s165 + $0x28] sm:$0xff]
      %v177 = vld [vmem:[%s165 + $0x30] sm:$0xf]
      %v178 = vld [vmem:[%s165 + $0x38] sm:$0xf]
      %v179 = vld [vmem:[%s165 + $0x40] sm:$0xf]
      %v180 = vld [vmem:[%s165 + $0x48] sm:$0xf]
      %v181 = vld [vmem:[%s165 + $0x50] sm:$0xf]
      %v182 = vld [vmem:[%s165 + $0x58] sm:$0xf]
      %195 = vrot.lane.b32.xlu0 %v171, 64
      %v196 = vpop.permute.xlu0 %195
      %197 = vrot.lane.b32.xlu0 %v172, 64
      %v198 = vpop.permute.xlu0 %197
      %199 = vrot.lane.b32.xlu0 %v173, 64
      %v200 = vpop.permute.xlu0 %199
      %201 = vrot.lane.b32.xlu0 %v174, 64
      %v202 = vpop.permute.xlu0 %201
      %203 = vrot.lane.b32.xlu0 %v175, 64
      %v204 = vpop.permute.xlu0 %203
      %205 = vrot.lane.b32.xlu0 %v176, 64
      %v206 = vpop.permute.xlu0 %205
      %207 = vrot.lane.b32.xlu0 %v177, 64
      %v208 = vpop.permute.xlu0 %207
      %209 = vrot.lane.b32.xlu0 %v178, 64
      %v210 = vpop.permute.xlu0 %209
      %211 = vrot.lane.b32.xlu0 %v179, 64
      %v212 = vpop.permute.xlu0 %211
      %213 = vrot.lane.b32.xlu0 %v180, 64
      %v214 = vpop.permute.xlu0 %213
      %215 = vrot.lane.b32.xlu0 %v181, 64
      %v216 = vpop.permute.xlu0 %215
      %217 = vrot.lane.b32.xlu0 %v182, 64
      %v218 = vpop.permute.xlu0 %217
      %vm219 = vcmask 523264
      %v220 = vsel %vm219, %v196, %v198
      %v221 = vsel %vm219, %v198, %v200
      %v222 = vsel %vm219, %v200, %v202
      %v223 = vsel %vm219, %v202, %v204
      %v224 = vsel %vm219, %v204, %v206
      %v225 = vsel %vm219, %v208, %v210
      %v226 = vsel %vm219, %v210, %v212
      %v227 = vsel %vm219, %v212, %v214
      %v228 = vsel %vm219, %v214, %v216
      %v229 = vsel %vm219, %v216, %v218
      %v242 = vsel %vm219, %v206, -3.4028235e+38
      %v243 = vsel %vm219, %v218, -3.4028235e+38
      %v246 = vsel %vm219, -3.4028235e+38, %v196
      %v247 = vsel %vm219, -3.4028235e+38, %v208
      %v248 = vmax.f32 %v220, %v246
      %v249 = vmax.f32 %v221, %v220
      %v250 = vmax.f32 %v222, %v221
      %v251 = vmax.f32 %v223, %v222
      %v252 = vmax.f32 %v224, %v223
      %v253 = vmax.f32 %v242, %v224
      %v254 = vmax.f32 %v225, %v247
      %v255 = vmax.f32 %v226, %v225
      %v256 = vmax.f32 %v227, %v226
      %v257 = vmax.f32 %v228, %v227
      %v258 = vmax.f32 %v229, %v228
      %v259 = vmax.f32 %v243, %v229
      %v260 = vmax.f32 %v248, %v171
      %v261 = vmax.f32 %v249, %v172
      %v262 = vmax.f32 %v250, %v173
      %v263 = vmax.f32 %v251, %v174
      %v264 = vmax.f32 %v252, %v175
      %v265 = vmax.f32 %v253, %v176
      %v266 = vmax.f32 %v254, %v177
      %v267 = vmax.f32 %v255, %v178
      %v268 = vmax.f32 %v256, %v179
      %v269 = vmax.f32 %v257, %v180
      %v270 = vmax.f32 %v258, %v181
      %v271 = vmax.f32 %v259, %v182
      %vm284 = vcmask 1046528
      %v285 = vrot.slane %v260, 1
      %v286 = vrot.slane %v266, 1
      %v287 = vsel %vm284, %v285, %v286
      %v288 = vrot.slane %v261, 1
      %v289 = vrot.slane %v267, 1
      %v290 = vsel %vm284, %v288, %v289
      %v291 = vrot.slane %v262, 1
      %v292 = vrot.slane %v268, 1
      %v293 = vsel %vm284, %v291, %v292
      %v294 = vrot.slane %v263, 1
      %v295 = vrot.slane %v269, 1
      %v296 = vsel %vm284, %v294, %v295
      %v297 = vrot.slane %v264, 1
      %v298 = vrot.slane %v270, 1
      %v299 = vsel %vm284, %v297, %v298
      %v300 = vrot.slane %v265, 1
      %v301 = vrot.slane %v271, 1
      %v302 = vsel %vm284, %v300, %v301
      %vm315 = vcmask 1042432
      %v316 = vsel %vm315, %v286, -3.4028235e+38
      %v317 = vsel %vm315, %v289, -3.4028235e+38
      %v318 = vsel %vm315, %v292, -3.4028235e+38
      %v319 = vsel %vm315, %v295, -3.4028235e+38
      %v320 = vsel %vm315, %v298, -3.4028235e+38
      %v321 = vsel %vm315, %v301, -3.4028235e+38
      %vm322 = vcmask 1040384
      %v323 = vrot.slane %v260, 7
      %v324 = vrot.slane %v261, 7
      %v325 = vrot.slane %v262, 7
      %v326 = vrot.slane %v263, 7
      %v327 = vrot.slane %v264, 7
      %v328 = vrot.slane %v265, 7
      %v329 = vrot.slane %v266, 7
      %v330 = vsel %vm322, %v323, %v329
      %v331 = vrot.slane %v267, 7
      %v332 = vsel %vm322, %v324, %v331
      %v333 = vrot.slane %v268, 7
      %v334 = vsel %vm322, %v325, %v333
      %v335 = vrot.slane %v269, 7
      %v336 = vsel %vm322, %v326, %v335
      %v337 = vrot.slane %v270, 7
      %v338 = vsel %vm322, %v327, %v337
      %v339 = vrot.slane %v271, 7
      %v340 = vsel %vm322, %v328, %v339
      %v353 = vsel %vm322, -3.4028235e+38, %v323
      %v354 = vsel %vm322, -3.4028235e+38, %v324
      %v355 = vsel %vm322, -3.4028235e+38, %v325
      %v356 = vsel %vm322, -3.4028235e+38, %v326
      %v357 = vsel %vm322, -3.4028235e+38, %v327
      %v358 = vsel %vm322, -3.4028235e+38, %v328
      %v359 = vmax.f32 %v287, %v353
      %v360 = vmax.f32 %v290, %v354
      %v361 = vmax.f32 %v293, %v355
      %v362 = vmax.f32 %v296, %v356
      %v363 = vmax.f32 %v299, %v357
      %v364 = vmax.f32 %v302, %v358
      %v365 = vmax.f32 %v316, %v330
      %v366 = vmax.f32 %v317, %v332
      %v367 = vmax.f32 %v318, %v334
      %v368 = vmax.f32 %v319, %v336
      %v369 = vmax.f32 %v320, %v338
      %v370 = vmax.f32 %v321, %v340
      %v371 = vmax.f32 %v359, %v260
      %v372 = vmax.f32 %v360, %v261
      %v373 = vmax.f32 %v361, %v262
      %v374 = vmax.f32 %v362, %v263
      %v375 = vmax.f32 %v363, %v264
      %v376 = vmax.f32 %v364, %v265
      %v377 = vmax.f32 %v365, %v266
      %v378 = vmax.f32 %v366, %v267
      %v379 = vmax.f32 %v367, %v268
      %v380 = vmax.f32 %v368, %v269
      %v381 = vmax.f32 %v369, %v270
      %v382 = vmax.f32 %v370, %v271
      %385 = vrot.lane.b32.xlu0 %v371, 64
      %v386 = vpop.permute.xlu0 %385
      %387 = vrot.lane.b32.xlu0 %v377, 64
      %v388 = vpop.permute.xlu0 %387
      %401 = vrot.lane.b32.xlu0 %v372, 64
      %v402 = vpop.permute.xlu0 %401
      %403 = vrot.lane.b32.xlu0 %v373, 64
      %v404 = vpop.permute.xlu0 %403
      %405 = vrot.lane.b32.xlu0 %v374, 64
      %v406 = vpop.permute.xlu0 %405
      %407 = vrot.lane.b32.xlu0 %v375, 64
      %v408 = vpop.permute.xlu0 %407
      %409 = vrot.lane.b32.xlu0 %v376, 64
      %v410 = vpop.permute.xlu0 %409
      %411 = vrot.lane.b32.xlu0 %v378, 64
      %v412 = vpop.permute.xlu0 %411
      %413 = vrot.lane.b32.xlu0 %v379, 64
      %v414 = vpop.permute.xlu0 %413
      %415 = vrot.lane.b32.xlu0 %v380, 64
      %v416 = vpop.permute.xlu0 %415
      %417 = vrot.lane.b32.xlu0 %v381, 64
      %v418 = vpop.permute.xlu0 %417
      %419 = vrot.lane.b32.xlu0 %v382, 64
      %v420 = vpop.permute.xlu0 %419
      %v421 = vsel %vm219, %v386, %v402
      %v422 = vsel %vm219, %v402, %v404
      %v423 = vsel %vm219, %v404, %v406
      %v424 = vsel %vm219, %v406, %v408
      %v425 = vsel %vm219, %v408, %v410
      %v426 = vsel %vm219, %v388, %v412
      %v427 = vsel %vm219, %v412, %v414
      %v428 = vsel %vm219, %v414, %v416
      %v429 = vsel %vm219, %v416, %v418
      %v430 = vsel %vm219, %v418, %v420
      %v435 = vrot.slane %v386, 1
      %v436 = vrot.slane %v421, 1
      %v437 = vrot.slane %v422, 1
      %v438 = vrot.slane %v423, 1
      %v439 = vrot.slane %v424, 1
      %v440 = vrot.slane %v425, 1
      %v441 = vrot.slane %v410, 1
      %v451 = vrot.slane %v386, 7
      %v452 = vrot.slane %v421, 7
      %v453 = vrot.slane %v422, 7
      %v454 = vrot.slane %v423, 7
      %v455 = vrot.slane %v424, 7
      %v456 = vrot.slane %v425, 7
      %v457 = vrot.slane %v410, 7
      %v458 = vrot.slane %v388, 7
      %v459 = vsel %vm322, %v451, %v458
      %v460 = vrot.slane %v426, 7
      %v461 = vsel %vm322, %v452, %v460
      %v462 = vrot.slane %v427, 7
      %v463 = vsel %vm322, %v453, %v462
      %v464 = vrot.slane %v428, 7
      %v465 = vsel %vm322, %v454, %v464
      %v466 = vrot.slane %v429, 7
      %v467 = vsel %vm322, %v455, %v466
      %v468 = vrot.slane %v430, 7
      %v469 = vsel %vm322, %v456, %v468
      %v470 = vrot.slane %v420, 7
      %v471 = vsel %vm322, %v457, %v470
      %v486 = vrot.slane %v388, 5
      %v487 = vrot.slane %v426, 5
      %v488 = vrot.slane %v427, 5
      %v489 = vrot.slane %v428, 5
      %v490 = vrot.slane %v429, 5
      %v491 = vrot.slane %v430, 5
      %v492 = vrot.slane %v420, 5
      %v500 = vrot.slane %v388, 3
      %v501 = vrot.slane %v426, 3
      %v502 = vrot.slane %v427, 3
      %v503 = vrot.slane %v428, 3
      %v504 = vrot.slane %v429, 3
      %v505 = vrot.slane %v430, 3
      %v506 = vrot.slane %v420, 3
      %v514 = vsel %vm322, %v435, %v451
      %v515 = vsel %vm322, %v436, %v452
      %v516 = vsel %vm322, %v437, %v453
      %v517 = vsel %vm322, %v438, %v454
      %v518 = vsel %vm322, %v439, %v455
      %v519 = vsel %vm322, %v440, %v456
      %v520 = vsel %vm322, %v441, %v457
      %vm521 = vcmask 1044480
      %v522 = vsel %vm521, %v459, %v486
      %v523 = vsel %vm521, %v461, %v487
      %v524 = vsel %vm521, %v463, %v488
      %v525 = vsel %vm521, %v465, %v489
      %v526 = vsel %vm521, %v467, %v490
      %v527 = vsel %vm521, %v469, %v491
      %v528 = vsel %vm521, %v471, %v492
      %vm529 = vcmask 1045504
      %v530 = vsel %vm529, %v522, %v500
      %v531 = vsel %vm529, %v523, %v501
      %v532 = vsel %vm529, %v524, %v502
      %v533 = vsel %vm529, %v525, %v503
      %v534 = vsel %vm529, %v526, %v504
      %v535 = vsel %vm529, %v527, %v505
      %v536 = vsel %vm529, %v528, %v506
      %v537 = vmul.f32 %v514, 3.0
      %v538 = vmul.f32 %v530, 3.0
      %541 = vrot.lane.b32.xlu0 %v537, 64
      %v542 = vpop.permute.xlu0 %541
      %543 = vrot.lane.b32.xlu0 %v538, 64
      %v544 = vpop.permute.xlu0 %543
      %v547 = vadd.f32 %v514, %v542
      %v548 = vadd.f32 %v530, %v544
      %v549 = vmul.f32 %v515, 3.0
      %v550 = vmul.f32 %v531, 3.0
      %v551 = vadd.f32 %v547, %v549
      %v552 = vadd.f32 %v548, %v550
      %555 = vrot.lane.b32.xlu0 %v515, 64
      %v556 = vpop.permute.xlu0 %555
      %557 = vrot.lane.b32.xlu0 %v531, 64
      %v558 = vpop.permute.xlu0 %557
      %v561 = vadd.f32 %v551, %v556
      %v562 = vadd.f32 %v552, %v558
      %v563 = vmul.f32 %v516, 3.0
      %v564 = vmul.f32 %v532, 3.0
      %567 = vrot.lane.b32.xlu0 %v563, 64
      %v568 = vpop.permute.xlu0 %567
      %569 = vrot.lane.b32.xlu0 %v564, 64
      %v570 = vpop.permute.xlu0 %569
      %v573 = vadd.f32 %v515, %v568
      %v574 = vadd.f32 %v531, %v570
      %v575 = vadd.f32 %v573, %v563
      %v576 = vadd.f32 %v574, %v564
      %579 = vrot.lane.b32.xlu0 %v517, 64
      %v580 = vpop.permute.xlu0 %579
      %581 = vrot.lane.b32.xlu0 %v533, 64
      %v582 = vpop.permute.xlu0 %581
      %v585 = vadd.f32 %v575, %v580
      %v586 = vadd.f32 %v576, %v582
      %v587 = vmul.f32 %v517, 3.0
      %v588 = vmul.f32 %v533, 3.0
      %591 = vrot.lane.b32.xlu0 %v587, 64
      %v592 = vpop.permute.xlu0 %591
      %593 = vrot.lane.b32.xlu0 %v588, 64
      %v594 = vpop.permute.xlu0 %593
      %v597 = vadd.f32 %v517, %v592
      %v598 = vadd.f32 %v533, %v594
      %v599 = vmul.f32 %v518, 3.0
      %v600 = vmul.f32 %v534, 3.0
      %v601 = vadd.f32 %v597, %v599
      %v602 = vadd.f32 %v598, %v600
      %605 = vrot.lane.b32.xlu0 %v518, 64
      %v606 = vpop.permute.xlu0 %605
      %607 = vrot.lane.b32.xlu0 %v534, 64
      %v608 = vpop.permute.xlu0 %607
      %v611 = vadd.f32 %v601, %v606
      %v612 = vadd.f32 %v602, %v608
      %v613 = vmul.f32 %v519, 3.0
      %v614 = vmul.f32 %v535, 3.0
      %617 = vrot.lane.b32.xlu0 %v613, 64
      %v618 = vpop.permute.xlu0 %617
      %619 = vrot.lane.b32.xlu0 %v614, 64
      %v620 = vpop.permute.xlu0 %619
      %v623 = vadd.f32 %v518, %v618
      %v624 = vadd.f32 %v534, %v620
      %v625 = vadd.f32 %v623, %v613
      %v626 = vadd.f32 %v624, %v614
      %629 = vrot.lane.b32.xlu0 %v520, 64
      %v630 = vpop.permute.xlu0 %629
      %631 = vrot.lane.b32.xlu0 %v536, 64
      %v632 = vpop.permute.xlu0 %631
      %v635 = vadd.f32 %v625, %v630
      %v636 = vadd.f32 %v626, %v632
      %v637 = vsel %vm219, %v561, %v585
      %v638 = vsel %vm219, %v562, %v586
      %v639 = vsel %vm219, %v611, %v635
      %v640 = vsel %vm219, %v612, %v636
      %v641 = vmul.f32 %v637, 0.015625
      %v642 = vmul.f32 %v639, 0.015625
      %v643 = vmul.f32 %v637, 0.046875
      %v644 = vmul.f32 %v639, 0.046875
      %v647 = vrot.slane %v643, 1
      %v648 = vrot.slane %v644, 1
      %v651 = vadd.f32 %v641, %v647
      %v652 = vadd.f32 %v642, %v648
      %v653 = vrot.slane %v643, 2
      %v654 = vrot.slane %v644, 2
      %v657 = vadd.f32 %v651, %v653
      %v658 = vadd.f32 %v652, %v654
      %v661 = vrot.slane %v641, 3
      %v662 = vrot.slane %v642, 3
      %v665 = vadd.f32 %v657, %v661
      %v666 = vadd.f32 %v658, %v662
      %v667 = vmul.f32 %v638, 0.046875
      %v668 = vmul.f32 %v640, 0.046875
      %v671 = vrot.slane %v667, 2
      %v672 = vrot.slane %v668, 2
      %v675 = vadd.f32 %v651, %v671
      %v676 = vadd.f32 %v652, %v672
      %v677 = vmul.f32 %v638, 0.015625
      %v678 = vmul.f32 %v640, 0.015625
      %v681 = vrot.slane %v677, 3
      %v682 = vrot.slane %v678, 3
      %v685 = vadd.f32 %v675, %v681
      %v686 = vadd.f32 %v676, %v682
      %v687 = vrot.slane %v667, 1
      %v688 = vrot.slane %v668, 1
      %v691 = vadd.f32 %v677, %v687
      %v692 = vadd.f32 %v678, %v688
      %v693 = vadd.f32 %v691, %v671
      %v694 = vadd.f32 %v692, %v672
      %v695 = vadd.f32 %v693, %v681
      %v696 = vadd.f32 %v694, %v682
      %v699 = vrot.slane %v665, 2
      %v700 = vrot.slane %v666, 2
      %v705 = vrot.slane %v685, 4
      %v706 = vrot.slane %v686, 4
      %v711 = vrot.slane %v695, 6
      %v712 = vrot.slane %v696, 6
      %v715 = vsel %vm322, %v665, %v699
      %v716 = vsel %vm322, %v666, %v700
      %vm717 = vcmask 1041408
      %v718 = vsel %vm717, %v715, %v705
      %v719 = vsel %vm717, %v716, %v706
      %v720 = vsel %vm315, %v718, %v711
      %v721 = vsel %vm315, %v719, %v712
      %v725 = vrot.slane 0.0, 4
      %v726 = vrot.slane %v720, 4
      %v727 = vrot.slane %v721, 4
      %vm731 = vcmask 1043456
      %v732 = vsel %vm731, 0.0, %v725
      %v733 = vsel %vm731, 0.0, %v726
      %v734 = vsel %vm731, 0.0, %v727
      %v735 = vld [vmem:[%s1] sm:$0xff]
      %v736 = vld [vmem:[%s1 + $0x8] sm:$0xff]
      %v737 = vld [vmem:[%s1 + $0x10] sm:$0xff]
      %v738 = vld [vmem:[%s1 + $0x18] sm:$0xff]
      %v739 = vld [vmem:[%s1 + $0x20] sm:$0xff]
      %v740 = vld [vmem:[%s1 + $0x28] sm:$0xff]
      %v741 = vld [vmem:[%s1 + $0x30] sm:$0xff]
      %v742 = vld [vmem:[%s1 + $0x38] sm:$0xff]
      %v743 = vld [vmem:[%s1 + $0x40] sm:$0xff]
      %v744 = vld [vmem:[%s1 + $0x48] sm:$0xff]
      %v745 = vld [vmem:[%s1 + $0x50] sm:$0x1f]
      %v746 = vld [vmem:[%s1 + $0x58] sm:$0x1f]
      %v747 = vlaneseq
      %v748 = vshrl.u32 %v747, 7
      %v749 = vsub.s32 0, %v748
      %v750 = vrot.slane %v735, %v749
      %v751 = vlaneseq
      %v752 = vshrl.u32 %v751, 7
      %v753 = vsub.s32 0, %v752
      %v754 = vrot.slane %v736, %v753
      %757 = vrot.lane.b32.xlu0 %v734, 64
      %v758 = vpop.permute.xlu0 %757
      %759 = vrot.lane.b32.xlu0 %v732, 64
      %v760 = vpop.permute.xlu0 %759
      %v761 = vsel %vm219, %v758, %v760
      %v764 = vmul.f32 %v750, %v761
      %v765 = vmul.f32 %v754, %v760
      %v766 = vadd.f32 %v764, 0.0
      %v767 = vadd.f32 %v765, 0.0
      %v768 = vlaneseq
      %v769 = vshrl.u32 %v768, 7
      %v770 = vsub.s32 1, %v769
      %v771 = vrot.slane %v735, %v770
      %v772 = vlaneseq
      %v773 = vshrl.u32 %v772, 7
      %v774 = vsub.s32 1, %v773
      %v775 = vrot.slane %v736, %v774
      %v777 = vrot.slane %v732, 1
      %v778 = vrot.slane %v733, 1
      %v779 = vrot.slane %v734, 1
      %780 = vrot.lane.b32.xlu0 %v777, 64
      %v781 = vpop.permute.xlu0 %780
      %782 = vrot.lane.b32.xlu0 %v778, 64
      %v783 = vpop.permute.xlu0 %782
      %784 = vrot.lane.b32.xlu0 %v779, 64
      %v785 = vpop.permute.xlu0 %784
      %v786 = vsel %vm219, %v781, %v783
      %v787 = vsel %vm219, %v783, %v785
      %v790 = vmul.f32 %v771, %v786
      %v791 = vmul.f32 %v775, %v787
      %v792 = vadd.f32 %v766, %v790
      %v793 = vadd.f32 %v767, %v791
      %v794 = vlaneseq
      %v795 = vshrl.u32 %v794, 7
      %v796 = vsub.s32 2, %v795
      %v797 = vrot.slane %v735, %v796
      %v798 = vlaneseq
      %v799 = vshrl.u32 %v798, 7
      %v800 = vsub.s32 2, %v799
      %v801 = vrot.slane %v736, %v800
      %v802 = vmul.f32 %v797, %v733
      %v803 = vmul.f32 %v801, %v734
      %v806 = vrot.slane %v802, 1
      %v807 = vrot.slane %v803, 1
      %v810 = vadd.f32 %v792, %v806
      %v811 = vadd.f32 %v793, %v807
      %v812 = vlaneseq
      %v813 = vshrl.u32 %v812, 7
      %v814 = vsub.s32 3, %v813
      %v815 = vrot.slane %v735, %v814
      %v816 = vlaneseq
      %v817 = vshrl.u32 %v816, 7
      %v818 = vsub.s32 3, %v817
      %v819 = vrot.slane %v736, %v818
      %v820 = vsel %vm219, %v785, %v781
      %v822 = vmul.f32 %v815, %v787
      %v823 = vmul.f32 %v819, %v820
      %v824 = vadd.f32 %v810, %v822
      %v825 = vadd.f32 %v811, %v823
      %v826 = vlaneseq
      %v827 = vshrl.u32 %v826, 7
      %v828 = vsub.s32 4, %v827
      %v829 = vrot.slane %v735, %v828
      %v830 = vlaneseq
      %v831 = vshrl.u32 %v830, 7
      %v832 = vsub.s32 4, %v831
      %v833 = vrot.slane %v736, %v832
      %v834 = vmul.f32 %v829, %v734
      %v835 = vmul.f32 %v833, %v732
      %v838 = vrot.slane %v834, 1
      %v839 = vrot.slane %v835, 1
      %v842 = vadd.f32 %v824, %v838
      %v843 = vadd.f32 %v825, %v839
      %v844 = vlaneseq
      %v845 = vshrl.u32 %v844, 7
      %v846 = vsub.s32 5, %v845
      %v847 = vrot.slane %v735, %v846
      %v848 = vlaneseq
      %v849 = vshrl.u32 %v848, 7
      %v850 = vsub.s32 5, %v849
      %v851 = vrot.slane %v736, %v850
      %v853 = vmul.f32 %v847, %v820
      %v854 = vmul.f32 %v851, %v781
      %v855 = vadd.f32 %v842, %v853
      %v856 = vadd.f32 %v843, %v854
      %v857 = vlaneseq
      %v858 = vshrl.u32 %v857, 7
      %v859 = vsub.s32 6, %v858
      %v860 = vrot.slane %v735, %v859
      %v861 = vlaneseq
      %v862 = vshrl.u32 %v861, 7
      %v863 = vsub.s32 6, %v862
      %v864 = vrot.slane %v736, %v863
      %v865 = vmul.f32 %v860, %v732
      %v866 = vmul.f32 %v864, %v732
      %v869 = vrot.slane %v865, 1
      %v870 = vrot.slane %v866, 1
      %v873 = vadd.f32 %v855, %v869
      %v874 = vadd.f32 %v856, %v870
      %v875 = vlaneseq
      %v876 = vshrl.u32 %v875, 7
      %v877 = vsub.s32 7, %v876
      %v878 = vrot.slane %v735, %v877
      %v879 = vlaneseq
      %v880 = vshrl.u32 %v879, 7
      %v881 = vsub.s32 7, %v880
      %v882 = vrot.slane %v736, %v881
      %v883 = vrot.slane %v732, 2
      %v884 = vrot.slane %v733, 2
      %v885 = vrot.slane %v734, 2
      %886 = vrot.lane.b32.xlu0 %v883, 64
      %v887 = vpop.permute.xlu0 %886
      %888 = vrot.lane.b32.xlu0 %v884, 64
      %v889 = vpop.permute.xlu0 %888
      %890 = vrot.lane.b32.xlu0 %v885, 64
      %v891 = vpop.permute.xlu0 %890
      %v892 = vsel %vm219, %v887, %v889
      %v893 = vsel %vm219, %v889, %v891
      %v896 = vmul.f32 %v878, %v892
      %v897 = vmul.f32 %v882, %v893
      %v898 = vadd.f32 %v873, %v896
      %v899 = vadd.f32 %v874, %v897
      %v900 = vlaneseq
      %v901 = vshrl.u32 %v900, 7
      %v902 = vsub.s32 0, %v901
      %v903 = vrot.slane %v737, %v902
      %v904 = vlaneseq
      %v905 = vshrl.u32 %v904, 7
      %v906 = vsub.s32 0, %v905
      %v907 = vrot.slane %v738, %v906
      %v908 = vmul.f32 %v903, %v733
      %v909 = vmul.f32 %v907, %v734
      %v912 = vrot.slane %v908, 2
      %v913 = vrot.slane %v909, 2
      %v916 = vadd.f32 %v898, %v912
      %v917 = vadd.f32 %v899, %v913
      %v918 = vlaneseq
      %v919 = vshrl.u32 %v918, 7
      %v920 = vsub.s32 1, %v919
      %v921 = vrot.slane %v737, %v920
      %v922 = vlaneseq
      %v923 = vshrl.u32 %v922, 7
      %v924 = vsub.s32 1, %v923
      %v925 = vrot.slane %v738, %v924
      %v926 = vsel %vm219, %v891, %v887
      %v928 = vmul.f32 %v921, %v893
      %v929 = vmul.f32 %v925, %v926
      %v930 = vadd.f32 %v916, %v928
      %v931 = vadd.f32 %v917, %v929
      %v932 = vlaneseq
      %v933 = vshrl.u32 %v932, 7
      %v934 = vsub.s32 2, %v933
      %v935 = vrot.slane %v737, %v934
      %v936 = vlaneseq
      %v937 = vshrl.u32 %v936, 7
      %v938 = vsub.s32 2, %v937
      %v939 = vrot.slane %v738, %v938
      %v940 = vmul.f32 %v935, %v734
      %v941 = vmul.f32 %v939, %v732
      %v944 = vrot.slane %v940, 2
      %v945 = vrot.slane %v941, 2
      %v948 = vadd.f32 %v930, %v944
      %v949 = vadd.f32 %v931, %v945
      %v950 = vlaneseq
      %v951 = vshrl.u32 %v950, 7
      %v952 = vsub.s32 3, %v951
      %v953 = vrot.slane %v737, %v952
      %v954 = vlaneseq
      %v955 = vshrl.u32 %v954, 7
      %v956 = vsub.s32 3, %v955
      %v957 = vrot.slane %v738, %v956
      %v959 = vmul.f32 %v953, %v926
      %v960 = vmul.f32 %v957, %v887
      %v961 = vadd.f32 %v948, %v959
      %v962 = vadd.f32 %v949, %v960
      %v963 = vlaneseq
      %v964 = vshrl.u32 %v963, 7
      %v965 = vsub.s32 4, %v964
      %v966 = vrot.slane %v737, %v965
      %v967 = vlaneseq
      %v968 = vshrl.u32 %v967, 7
      %v969 = vsub.s32 4, %v968
      %v970 = vrot.slane %v738, %v969
      %v971 = vrot.slane %v732, 3
      %v972 = vrot.slane %v733, 3
      %973 = vrot.lane.b32.xlu0 %v971, 64
      %v974 = vpop.permute.xlu0 %973
      %975 = vrot.lane.b32.xlu0 %v972, 64
      %v976 = vpop.permute.xlu0 %975
      %v977 = vsel %vm219, %v974, %v976
      %v980 = vmul.f32 %v966, %v974
      %v981 = vmul.f32 %v970, %v977
      %v982 = vadd.f32 %v961, %v980
      %v983 = vadd.f32 %v962, %v981
      %v984 = vlaneseq
      %v985 = vshrl.u32 %v984, 7
      %v986 = vsub.s32 5, %v985
      %v987 = vrot.slane %v737, %v986
      %v988 = vlaneseq
      %v989 = vshrl.u32 %v988, 7
      %v990 = vsub.s32 5, %v989
      %v991 = vrot.slane %v738, %v990
      %v992 = vmul.f32 %v987, %v732
      %v993 = vmul.f32 %v991, %v733
      %v996 = vrot.slane %v992, 3
      %v997 = vrot.slane %v993, 3
      %v1000 = vadd.f32 %v982, %v996
      %v1001 = vadd.f32 %v983, %v997
      %v1002 = vlaneseq
      %v1003 = vshrl.u32 %v1002, 7
      %v1004 = vsub.s32 6, %v1003
      %v1005 = vrot.slane %v737, %v1004
      %v1006 = vlaneseq
      %v1007 = vshrl.u32 %v1006, 7
      %v1008 = vsub.s32 6, %v1007
      %v1009 = vrot.slane %v738, %v1008
      %v1010 = vrot.slane %v734, 3
      %1011 = vrot.lane.b32.xlu0 %v1010, 64
      %v1012 = vpop.permute.xlu0 %1011
      %v1013 = vsel %vm219, %v976, %v1012
      %v1015 = vmul.f32 %v1005, %v977
      %v1016 = vmul.f32 %v1009, %v1013
      %v1017 = vadd.f32 %v1000, %v1015
      %v1018 = vadd.f32 %v1001, %v1016
      %v1019 = vlaneseq
      %v1020 = vshrl.u32 %v1019, 7
      %v1021 = vsub.s32 7, %v1020
      %v1022 = vrot.slane %v737, %v1021
      %v1023 = vlaneseq
      %v1024 = vshrl.u32 %v1023, 7
      %v1025 = vsub.s32 7, %v1024
      %v1026 = vrot.slane %v738, %v1025
      %v1027 = vmul.f32 %v1022, %v733
      %v1028 = vmul.f32 %v1026, %v734
      %v1031 = vrot.slane %v1027, 3
      %v1032 = vrot.slane %v1028, 3
      %v1035 = vadd.f32 %v1017, %v1031
      %v1036 = vadd.f32 %v1018, %v1032
      %v1037 = vlaneseq
      %v1038 = vshrl.u32 %v1037, 7
      %v1039 = vsub.s32 0, %v1038
      %v1040 = vrot.slane %v739, %v1039
      %v1041 = vlaneseq
      %v1042 = vshrl.u32 %v1041, 7
      %v1043 = vsub.s32 0, %v1042
      %v1044 = vrot.slane %v740, %v1043
      %v1045 = vsel %vm219, %v1012, %v974
      %v1047 = vmul.f32 %v1040, %v1013
      %v1048 = vmul.f32 %v1044, %v1045
      %v1049 = vadd.f32 %v1035, %v1047
      %v1050 = vadd.f32 %v1036, %v1048
      %v1051 = vlaneseq
      %v1052 = vshrl.u32 %v1051, 7
      %v1053 = vsub.s32 1, %v1052
      %v1054 = vrot.slane %v739, %v1053
      %v1055 = vlaneseq
      %v1056 = vshrl.u32 %v1055, 7
      %v1057 = vsub.s32 1, %v1056
      %v1058 = vrot.slane %v740, %v1057
      %v1059 = vmul.f32 %v1054, %v734
      %v1060 = vmul.f32 %v1058, %v732
      %v1063 = vrot.slane %v1059, 3
      %v1064 = vrot.slane %v1060, 3
      %v1067 = vadd.f32 %v1049, %v1063
      %v1068 = vadd.f32 %v1050, %v1064
      %v1069 = vlaneseq
      %v1070 = vshrl.u32 %v1069, 7
      %v1071 = vsub.s32 2, %v1070
      %v1072 = vrot.slane %v739, %v1071
      %v1073 = vlaneseq
      %v1074 = vshrl.u32 %v1073, 7
      %v1075 = vsub.s32 2, %v1074
      %v1076 = vrot.slane %v740, %v1075
      %v1077 = vmul.f32 %v1072, %v1045
      %v1078 = vmul.f32 %v1076, %v974
      %v1079 = vadd.f32 %v1067, %v1077
      %v1080 = vadd.f32 %v1068, %v1078
      %v1081 = vlaneseq
      %v1082 = vshrl.u32 %v1081, 7
      %v1083 = vsub.s32 3, %v1082
      %v1084 = vrot.slane %v739, %v1083
      %v1085 = vlaneseq
      %v1086 = vshrl.u32 %v1085, 7
      %v1087 = vsub.s32 3, %v1086
      %v1088 = vrot.slane %v740, %v1087
      %v1089 = vrot.slane %v732, 4
      %v1090 = vrot.slane %v733, 4
      %1091 = vrot.lane.b32.xlu0 %v1089, 64
      %v1092 = vpop.permute.xlu0 %1091
      %1093 = vrot.lane.b32.xlu0 %v1090, 64
      %v1094 = vpop.permute.xlu0 %1093
      %v1095 = vsel %vm219, %v1092, %v1094
      %v1098 = vmul.f32 %v1084, %v1092
      %v1099 = vmul.f32 %v1088, %v1095
      %v1100 = vadd.f32 %v1079, %v1098
      %v1101 = vadd.f32 %v1080, %v1099
      %v1102 = vlaneseq
      %v1103 = vshrl.u32 %v1102, 7
      %v1104 = vsub.s32 4, %v1103
      %v1105 = vrot.slane %v739, %v1104
      %v1106 = vlaneseq
      %v1107 = vshrl.u32 %v1106, 7
      %v1108 = vsub.s32 4, %v1107
      %v1109 = vrot.slane %v740, %v1108
      %v1110 = vmul.f32 %v1105, %v732
      %v1111 = vmul.f32 %v1109, %v733
      %v1114 = vrot.slane %v1110, 4
      %v1115 = vrot.slane %v1111, 4
      %v1118 = vadd.f32 %v1100, %v1114
      %v1119 = vadd.f32 %v1101, %v1115
      %v1120 = vlaneseq
      %v1121 = vshrl.u32 %v1120, 7
      %v1122 = vsub.s32 5, %v1121
      %v1123 = vrot.slane %v739, %v1122
      %v1124 = vlaneseq
      %v1125 = vshrl.u32 %v1124, 7
      %v1126 = vsub.s32 5, %v1125
      %v1127 = vrot.slane %v740, %v1126
      %v1128 = vrot.slane %v734, 4
      %1129 = vrot.lane.b32.xlu0 %v1128, 64
      %v1130 = vpop.permute.xlu0 %1129
      %v1131 = vsel %vm219, %v1094, %v1130
      %v1133 = vmul.f32 %v1123, %v1095
      %v1134 = vmul.f32 %v1127, %v1131
      %v1135 = vadd.f32 %v1118, %v1133
      %v1136 = vadd.f32 %v1119, %v1134
      %v1137 = vlaneseq
      %v1138 = vshrl.u32 %v1137, 7
      %v1139 = vsub.s32 6, %v1138
      %v1140 = vrot.slane %v739, %v1139
      %v1141 = vlaneseq
      %v1142 = vshrl.u32 %v1141, 7
      %v1143 = vsub.s32 6, %v1142
      %v1144 = vrot.slane %v740, %v1143
      %v1145 = vmul.f32 %v1140, %v733
      %v1146 = vmul.f32 %v1144, %v734
      %v1149 = vrot.slane %v1145, 4
      %v1150 = vrot.slane %v1146, 4
      %v1153 = vadd.f32 %v1135, %v1149
      %v1154 = vadd.f32 %v1136, %v1150
      %v1155 = vlaneseq
      %v1156 = vshrl.u32 %v1155, 7
      %v1157 = vsub.s32 7, %v1156
      %v1158 = vrot.slane %v739, %v1157
      %v1159 = vlaneseq
      %v1160 = vshrl.u32 %v1159, 7
      %v1161 = vsub.s32 7, %v1160
      %v1162 = vrot.slane %v740, %v1161
      %v1163 = vsel %vm219, %v1130, %v1092
      %v1165 = vmul.f32 %v1158, %v1131
      %v1166 = vmul.f32 %v1162, %v1163
      %v1167 = vadd.f32 %v1153, %v1165
      %v1168 = vadd.f32 %v1154, %v1166
      %v1169 = vlaneseq
      %v1170 = vshrl.u32 %v1169, 7
      %v1171 = vsub.s32 0, %v1170
      %v1172 = vrot.slane %v741, %v1171
      %v1173 = vlaneseq
      %v1174 = vshrl.u32 %v1173, 7
      %v1175 = vsub.s32 0, %v1174
      %v1176 = vrot.slane %v742, %v1175
      %v1177 = vmul.f32 %v1172, %v734
      %v1178 = vmul.f32 %v1176, %v732
      %v1181 = vrot.slane %v1177, 4
      %v1182 = vrot.slane %v1178, 4
      %v1185 = vadd.f32 %v1167, %v1181
      %v1186 = vadd.f32 %v1168, %v1182
      %v1187 = vlaneseq
      %v1188 = vshrl.u32 %v1187, 7
      %v1189 = vsub.s32 1, %v1188
      %v1190 = vrot.slane %v741, %v1189
      %v1191 = vlaneseq
      %v1192 = vshrl.u32 %v1191, 7
      %v1193 = vsub.s32 1, %v1192
      %v1194 = vrot.slane %v742, %v1193
      %v1195 = vmul.f32 %v1190, %v1163
      %v1196 = vmul.f32 %v1194, %v1092
      %v1197 = vadd.f32 %v1185, %v1195
      %v1198 = vadd.f32 %v1186, %v1196
      %v1199 = vlaneseq
      %v1200 = vshrl.u32 %v1199, 7
      %v1201 = vsub.s32 2, %v1200
      %v1202 = vrot.slane %v741, %v1201
      %v1203 = vlaneseq
      %v1204 = vshrl.u32 %v1203, 7
      %v1205 = vsub.s32 2, %v1204
      %v1206 = vrot.slane %v742, %v1205
      %v1207 = vrot.slane %v732, 5
      %v1208 = vrot.slane 0.0, 5
      %v1209 = vsel %vm315, %v1207, %v1208
      %v1210 = vrot.slane %v733, 5
      %v1211 = vsel %vm315, %v1210, %v1208
      %1212 = vrot.lane.b32.xlu0 %v1209, 64
      %v1213 = vpop.permute.xlu0 %1212
      %1214 = vrot.lane.b32.xlu0 %v1211, 64
      %v1215 = vpop.permute.xlu0 %1214
      %v1216 = vsel %vm219, %v1213, %v1215
      %v1219 = vmul.f32 %v1202, %v1213
      %v1220 = vmul.f32 %v1206, %v1216
      %v1221 = vadd.f32 %v1197, %v1219
      %v1222 = vadd.f32 %v1198, %v1220
      %v1223 = vlaneseq
      %v1224 = vshrl.u32 %v1223, 7
      %v1225 = vsub.s32 3, %v1224
      %v1226 = vrot.slane %v741, %v1225
      %v1227 = vlaneseq
      %v1228 = vshrl.u32 %v1227, 7
      %v1229 = vsub.s32 3, %v1228
      %v1230 = vrot.slane %v742, %v1229
      %v1231 = vmul.f32 %v1226, %v732
      %v1232 = vmul.f32 %v1230, %v733
      %v1233 = vmul.f32 %v1226, 0.0
      %v1234 = vmul.f32 %v1230, 0.0
      %v1239 = vrot.slane %v1231, 5
      %v1240 = vrot.slane %v1233, 5
      %v1241 = vsel %vm315, %v1239, %v1240
      %v1242 = vrot.slane %v1232, 5
      %v1243 = vrot.slane %v1234, 5
      %v1244 = vsel %vm315, %v1242, %v1243
      %v1247 = vadd.f32 %v1221, %v1241
      %v1248 = vadd.f32 %v1222, %v1244
      %v1249 = vlaneseq
      %v1250 = vshrl.u32 %v1249, 7
      %v1251 = vsub.s32 4, %v1250
      %v1252 = vrot.slane %v741, %v1251
      %v1253 = vlaneseq
      %v1254 = vshrl.u32 %v1253, 7
      %v1255 = vsub.s32 4, %v1254
      %v1256 = vrot.slane %v742, %v1255
      %v1257 = vrot.slane %v734, 5
      %v1258 = vsel %vm315, %v1257, %v1208
      %1259 = vrot.lane.b32.xlu0 %v1258, 64
      %v1260 = vpop.permute.xlu0 %1259
      %v1261 = vsel %vm219, %v1215, %v1260
      %v1263 = vmul.f32 %v1252, %v1216
      %v1264 = vmul.f32 %v1256, %v1261
      %v1265 = vadd.f32 %v1247, %v1263
      %v1266 = vadd.f32 %v1248, %v1264
      %v1267 = vlaneseq
      %v1268 = vshrl.u32 %v1267, 7
      %v1269 = vsub.s32 5, %v1268
      %v1270 = vrot.slane %v741, %v1269
      %v1271 = vlaneseq
      %v1272 = vshrl.u32 %v1271, 7
      %v1273 = vsub.s32 5, %v1272
      %v1274 = vrot.slane %v742, %v1273
      %v1275 = vmul.f32 %v1270, %v733
      %v1276 = vmul.f32 %v1274, %v734
      %v1277 = vmul.f32 %v1270, 0.0
      %v1278 = vmul.f32 %v1274, 0.0
      %v1283 = vrot.slane %v1275, 5
      %v1284 = vrot.slane %v1277, 5
      %v1285 = vsel %vm315, %v1283, %v1284
      %v1286 = vrot.slane %v1276, 5
      %v1287 = vrot.slane %v1278, 5
      %v1288 = vsel %vm315, %v1286, %v1287
      %v1291 = vadd.f32 %v1265, %v1285
      %v1292 = vadd.f32 %v1266, %v1288
      %v1293 = vlaneseq
      %v1294 = vshrl.u32 %v1293, 7
      %v1295 = vsub.s32 6, %v1294
      %v1296 = vrot.slane %v741, %v1295
      %v1297 = vlaneseq
      %v1298 = vshrl.u32 %v1297, 7
      %v1299 = vsub.s32 6, %v1298
      %v1300 = vrot.slane %v742, %v1299
      %v1301 = vsel %vm219, %v1260, %v1213
      %v1303 = vmul.f32 %v1296, %v1261
      %v1304 = vmul.f32 %v1300, %v1301
      %v1305 = vadd.f32 %v1291, %v1303
      %v1306 = vadd.f32 %v1292, %v1304
      %v1307 = vlaneseq
      %v1308 = vshrl.u32 %v1307, 7
      %v1309 = vsub.s32 7, %v1308
      %v1310 = vrot.slane %v741, %v1309
      %v1311 = vlaneseq
      %v1312 = vshrl.u32 %v1311, 7
      %v1313 = vsub.s32 7, %v1312
      %v1314 = vrot.slane %v742, %v1313
      %v1315 = vmul.f32 %v1310, %v734
      %v1316 = vmul.f32 %v1314, %v732
      %v1317 = vmul.f32 %v1310, 0.0
      %v1318 = vmul.f32 %v1314, 0.0
      %v1323 = vrot.slane %v1315, 5
      %v1324 = vrot.slane %v1317, 5
      %v1325 = vsel %vm315, %v1323, %v1324
      %v1326 = vrot.slane %v1316, 5
      %v1327 = vrot.slane %v1318, 5
      %v1328 = vsel %vm315, %v1326, %v1327
      %v1331 = vadd.f32 %v1305, %v1325
      %v1332 = vadd.f32 %v1306, %v1328
      %v1333 = vlaneseq
      %v1334 = vshrl.u32 %v1333, 7
      %v1335 = vsub.s32 0, %v1334
      %v1336 = vrot.slane %v743, %v1335
      %v1337 = vlaneseq
      %v1338 = vshrl.u32 %v1337, 7
      %v1339 = vsub.s32 0, %v1338
      %v1340 = vrot.slane %v744, %v1339
      %v1341 = vmul.f32 %v1336, %v1301
      %v1342 = vmul.f32 %v1340, %v1213
      %v1343 = vadd.f32 %v1331, %v1341
      %v1344 = vadd.f32 %v1332, %v1342
      %v1345 = vlaneseq
      %v1346 = vshrl.u32 %v1345, 7
      %v1347 = vsub.s32 1, %v1346
      %v1348 = vrot.slane %v743, %v1347
      %v1349 = vlaneseq
      %v1350 = vshrl.u32 %v1349, 7
      %v1351 = vsub.s32 1, %v1350
      %v1352 = vrot.slane %v744, %v1351
      %v1353 = vrot.slane %v732, 6
      %v1354 = vrot.slane 0.0, 6
      %v1355 = vsel %vm717, %v1353, %v1354
      %v1356 = vrot.slane %v733, 6
      %v1357 = vsel %vm717, %v1356, %v1354
      %1358 = vrot.lane.b32.xlu0 %v1355, 64
      %v1359 = vpop.permute.xlu0 %1358
      %1360 = vrot.lane.b32.xlu0 %v1357, 64
      %v1361 = vpop.permute.xlu0 %1360
      %v1362 = vsel %vm219, %v1359, %v1361
      %v1365 = vmul.f32 %v1348, %v1359
      %v1366 = vmul.f32 %v1352, %v1362
      %v1367 = vadd.f32 %v1343, %v1365
      %v1368 = vadd.f32 %v1344, %v1366
      %v1369 = vlaneseq
      %v1370 = vshrl.u32 %v1369, 7
      %v1371 = vsub.s32 2, %v1370
      %v1372 = vrot.slane %v743, %v1371
      %v1373 = vlaneseq
      %v1374 = vshrl.u32 %v1373, 7
      %v1375 = vsub.s32 2, %v1374
      %v1376 = vrot.slane %v744, %v1375
      %v1377 = vmul.f32 %v1372, %v732
      %v1378 = vmul.f32 %v1376, %v733
      %v1379 = vmul.f32 %v1372, 0.0
      %v1380 = vmul.f32 %v1376, 0.0
      %v1385 = vrot.slane %v1377, 6
      %v1386 = vrot.slane %v1379, 6
      %v1387 = vsel %vm717, %v1385, %v1386
      %v1388 = vrot.slane %v1378, 6
      %v1389 = vrot.slane %v1380, 6
      %v1390 = vsel %vm717, %v1388, %v1389
      %v1393 = vadd.f32 %v1367, %v1387
      %v1394 = vadd.f32 %v1368, %v1390
      %v1395 = vlaneseq
      %v1396 = vshrl.u32 %v1395, 7
      %v1397 = vsub.s32 3, %v1396
      %v1398 = vrot.slane %v743, %v1397
      %v1399 = vlaneseq
      %v1400 = vshrl.u32 %v1399, 7
      %v1401 = vsub.s32 3, %v1400
      %v1402 = vrot.slane %v744, %v1401
      %v1403 = vrot.slane %v734, 6
      %v1404 = vsel %vm717, %v1403, %v1354
      %1405 = vrot.lane.b32.xlu0 %v1404, 64
      %v1406 = vpop.permute.xlu0 %1405
      %v1407 = vsel %vm219, %v1361, %v1406
      %v1409 = vmul.f32 %v1398, %v1362
      %v1410 = vmul.f32 %v1402, %v1407
      %v1411 = vadd.f32 %v1393, %v1409
      %v1412 = vadd.f32 %v1394, %v1410
      %v1413 = vlaneseq
      %v1414 = vshrl.u32 %v1413, 7
      %v1415 = vsub.s32 4, %v1414
      %v1416 = vrot.slane %v743, %v1415
      %v1417 = vlaneseq
      %v1418 = vshrl.u32 %v1417, 7
      %v1419 = vsub.s32 4, %v1418
      %v1420 = vrot.slane %v744, %v1419
      %v1421 = vmul.f32 %v1416, %v733
      %v1422 = vmul.f32 %v1420, %v734
      %v1423 = vmul.f32 %v1416, 0.0
      %v1424 = vmul.f32 %v1420, 0.0
      %v1429 = vrot.slane %v1421, 6
      %v1430 = vrot.slane %v1423, 6
      %v1431 = vsel %vm717, %v1429, %v1430
      %v1432 = vrot.slane %v1422, 6
      %v1433 = vrot.slane %v1424, 6
      %v1434 = vsel %vm717, %v1432, %v1433
      %v1437 = vadd.f32 %v1411, %v1431
      %v1438 = vadd.f32 %v1412, %v1434
      %v1439 = vlaneseq
      %v1440 = vshrl.u32 %v1439, 7
      %v1441 = vsub.s32 5, %v1440
      %v1442 = vrot.slane %v743, %v1441
      %v1443 = vlaneseq
      %v1444 = vshrl.u32 %v1443, 7
      %v1445 = vsub.s32 5, %v1444
      %v1446 = vrot.slane %v744, %v1445
      %v1447 = vsel %vm219, %v1406, %v1359
      %v1449 = vmul.f32 %v1442, %v1407
      %v1450 = vmul.f32 %v1446, %v1447
      %v1451 = vadd.f32 %v1437, %v1449
      %v1452 = vadd.f32 %v1438, %v1450
      %v1453 = vlaneseq
      %v1454 = vshrl.u32 %v1453, 7
      %v1455 = vsub.s32 6, %v1454
      %v1456 = vrot.slane %v743, %v1455
      %v1457 = vlaneseq
      %v1458 = vshrl.u32 %v1457, 7
      %v1459 = vsub.s32 6, %v1458
      %v1460 = vrot.slane %v744, %v1459
      %v1461 = vmul.f32 %v1456, %v732
      %v1462 = vmul.f32 %v1460, %v732
      %v1463 = vmul.f32 %v1456, 0.0
      %v1464 = vmul.f32 %v1460, 0.0
      %v1469 = vrot.slane %v1461, 7
      %v1470 = vrot.slane %v1463, 7
      %v1471 = vsel %vm322, %v1469, %v1470
      %v1472 = vrot.slane %v1462, 7
      %v1473 = vrot.slane %v1464, 7
      %v1474 = vsel %vm322, %v1472, %v1473
      %v1477 = vadd.f32 %v1451, %v1471
      %v1478 = vadd.f32 %v1452, %v1474
      %v1479 = vlaneseq
      %v1480 = vshrl.u32 %v1479, 7
      %v1481 = vsub.s32 7, %v1480
      %v1482 = vrot.slane %v743, %v1481
      %v1483 = vlaneseq
      %v1484 = vshrl.u32 %v1483, 7
      %v1485 = vsub.s32 7, %v1484
      %v1486 = vrot.slane %v744, %v1485
      %v1487 = vrot.slane %v732, 7
      %v1488 = vrot.slane 0.0, 7
      %v1489 = vsel %vm322, %v1487, %v1488
      %v1490 = vrot.slane %v733, 7
      %v1491 = vsel %vm322, %v1490, %v1488
      %1492 = vrot.lane.b32.xlu0 %v1489, 64
      %v1493 = vpop.permute.xlu0 %1492
      %1494 = vrot.lane.b32.xlu0 %v1491, 64
      %v1495 = vpop.permute.xlu0 %1494
      %v1496 = vsel %vm219, %v1493, %v1495
      %v1499 = vmul.f32 %v1482, %v1493
      %v1500 = vmul.f32 %v1486, %v1496
      %v1501 = vadd.f32 %v1477, %v1499
      %v1502 = vadd.f32 %v1478, %v1500
      %v1503 = vlaneseq
      %v1504 = vshrl.u32 %v1503, 7
      %v1505 = vsub.s32 0, %v1504
      %v1506 = vrot.slane %v745, %v1505
      %v1507 = vlaneseq
      %v1508 = vshrl.u32 %v1507, 7
      %v1509 = vsub.s32 0, %v1508
      %v1510 = vrot.slane %v746, %v1509
      %v1511 = vmul.f32 %v1506, %v732
      %v1512 = vmul.f32 %v1510, %v733
      %v1513 = vmul.f32 %v1506, 0.0
      %v1514 = vmul.f32 %v1510, 0.0
      %v1519 = vrot.slane %v1511, 7
      %v1520 = vrot.slane %v1513, 7
      %v1521 = vsel %vm322, %v1519, %v1520
      %v1522 = vrot.slane %v1512, 7
      %v1523 = vrot.slane %v1514, 7
      %v1524 = vsel %vm322, %v1522, %v1523
      %v1527 = vadd.f32 %v1501, %v1521
      %v1528 = vadd.f32 %v1502, %v1524
      %v1529 = vlaneseq
      %v1530 = vshrl.u32 %v1529, 7
      %v1531 = vsub.s32 1, %v1530
      %v1532 = vrot.slane %v745, %v1531
      %v1533 = vlaneseq
      %v1534 = vshrl.u32 %v1533, 7
      %v1535 = vsub.s32 1, %v1534
      %v1536 = vrot.slane %v746, %v1535
      %v1537 = vrot.slane %v734, 7
      %v1538 = vsel %vm322, %v1537, %v1488
      %1539 = vrot.lane.b32.xlu0 %v1538, 64
      %v1540 = vpop.permute.xlu0 %1539
      %v1541 = vsel %vm219, %v1495, %v1540
      %v1543 = vmul.f32 %v1532, %v1496
      %v1544 = vmul.f32 %v1536, %v1541
      %v1545 = vadd.f32 %v1527, %v1543
      %v1546 = vadd.f32 %v1528, %v1544
      %v1547 = vlaneseq
      %v1548 = vshrl.u32 %v1547, 7
      %v1549 = vsub.s32 2, %v1548
      %v1550 = vrot.slane %v745, %v1549
      %v1551 = vlaneseq
      %v1552 = vshrl.u32 %v1551, 7
      %v1553 = vsub.s32 2, %v1552
      %v1554 = vrot.slane %v746, %v1553
      %v1555 = vmul.f32 %v1550, %v733
      %v1556 = vmul.f32 %v1554, %v734
      %v1557 = vmul.f32 %v1550, 0.0
      %v1558 = vmul.f32 %v1554, 0.0
      %v1563 = vrot.slane %v1555, 7
      %v1564 = vrot.slane %v1557, 7
      %v1565 = vsel %vm322, %v1563, %v1564
      %v1566 = vrot.slane %v1556, 7
      %v1567 = vrot.slane %v1558, 7
      %v1568 = vsel %vm322, %v1566, %v1567
      %v1571 = vadd.f32 %v1545, %v1565
      %v1572 = vadd.f32 %v1546, %v1568
      %v1573 = vlaneseq
      %v1574 = vshrl.u32 %v1573, 7
      %v1575 = vsub.s32 3, %v1574
      %v1576 = vrot.slane %v745, %v1575
      %v1577 = vlaneseq
      %v1578 = vshrl.u32 %v1577, 7
      %v1579 = vsub.s32 3, %v1578
      %v1580 = vrot.slane %v746, %v1579
      %v1581 = vsel %vm219, %v1540, %v1493
      %v1583 = vmul.f32 %v1576, %v1541
      %v1584 = vmul.f32 %v1580, %v1581
      %v1585 = vadd.f32 %v1571, %v1583
      %v1586 = vadd.f32 %v1572, %v1584
      %v1587 = vlaneseq
      %v1588 = vshrl.u32 %v1587, 7
      %v1589 = vsub.s32 4, %v1588
      %v1590 = vrot.slane %v745, %v1589
      %v1591 = vlaneseq
      %v1592 = vshrl.u32 %v1591, 7
      %v1593 = vsub.s32 4, %v1592
      %v1594 = vrot.slane %v746, %v1593
      %1595 = vrot.lane.b32.xlu0 0.0, 64
      %v1596 = vpop.permute.xlu0 %1595
      %v1598 = vmul.f32 %v1590, %v1596
      %v1599 = vmul.f32 %v1594, %v1596
      %v1600 = vadd.f32 %v1585, %v1598
      %v1601 = vadd.f32 %v1586, %v1599
      %v1602 = vld [vmem:[%s2] sm:$0xf]
      %v1604 = vlaneseq
      %v1605 = vshrl.u32 %v1604, 7
      %v1606 = vsub.s32 0, %v1605
      %v1607 = vrot.slane %v1602, %v1606
      %v1608 = vlaneseq
      %v1609 = vshrl.u32 %v1608, 7
      %v1610 = vsub.s32 2, %v1609
      %v1611 = vrot.slane %v1602, %v1610
      %v1614 = vlaneseq
      %v1615 = vshrl.u32 %v1614, 7
      %v1616 = vsub.s32 0, %v1615
      %v1617 = vrot.slane %v1607, %v1616
      %v1618 = vlaneseq
      %v1619 = vshrl.u32 %v1618, 7
      %v1620 = vsub.s32 0, %v1619
      %v1621 = vrot.slane %v1611, %v1620
      %v1622 = vmul.f32 %v1600, %v1617
      %v1623 = vmul.f32 %v1601, %v1621
      %v1624 = vlaneseq
      %v1625 = vshrl.u32 %v1624, 7
      %v1626 = vsub.s32 1, %v1625
      %v1627 = vrot.slane %v1602, %v1626
      %v1628 = vlaneseq
      %v1629 = vshrl.u32 %v1628, 7
      %v1630 = vsub.s32 3, %v1629
      %v1631 = vrot.slane %v1602, %v1630
      %v1634 = vlaneseq
      %v1635 = vshrl.u32 %v1634, 7
      %v1636 = vsub.s32 1, %v1635
      %v1637 = vrot.slane %v1627, %v1636
      %v1638 = vlaneseq
      %v1639 = vshrl.u32 %v1638, 7
      %v1640 = vsub.s32 1, %v1639
      %v1641 = vrot.slane %v1631, %v1640
      %v1642 = vadd.f32 %v1622, %v1637
      %v1643 = vadd.f32 %v1623, %v1641
      %v1644 = vsub.f32 0.0, %v1642
      %v1645 = vsub.f32 0.0, %v1643
      %v1646 = vmul.f32 %v1644, 1.442695
      %v1647 = vpow.pop %v1646
      %v1648 = vmul.f32 %v1645, 1.442695
      %v1649 = vpow.pop %v1648
      %v1650 = vadd.f32 %v1647, 1.0
      %v1651 = vadd.f32 %v1649, 1.0
      %v1652 = vrcp.pop %v1650
      %v1653 = vmul.f32 1.0, %v1652
      %v1654 = vrcp.pop %v1651
      %v1655 = vmul.f32 1.0, %v1654
      %1657 = vrot.lane.b32.xlu0 %v1653, 64
      %v1658 = vpop.permute.xlu0 %1657
      %1661 = vrot.lane.b32.xlu0 %v1655, 64
      %v1662 = vpop.permute.xlu0 %1661
      %v1664 = vsel %vm219, %v1653, %v1658
      %v1665 = vsel %vm219, %v1658, %v1653
      %v1666 = vsel %vm219, %v1655, %v1662
      %v1667 = vsel %vm219, %v1662, %v1655
      %v1672 = vrot.slane %v1664, 7
      %v1673 = vrot.slane %v1653, 7
      %v1674 = vrot.slane %v1665, 7
      %v1675 = vrot.slane %v1666, 7
      %v1676 = vrot.slane %v1655, 7
      %v1677 = vrot.slane %v1667, 7
      %v1684 = vrot.slane %v1664, 6
      %v1685 = vrot.slane %v1653, 6
      %v1686 = vrot.slane %v1665, 6
      %v1687 = vrot.slane %v1666, 6
      %v1688 = vrot.slane %v1655, 6
      %v1689 = vrot.slane %v1667, 6
      %v1696 = vrot.slane %v1664, 5
      %v1697 = vrot.slane %v1653, 5
      %v1698 = vrot.slane %v1665, 5
      %v1699 = vrot.slane %v1666, 5
      %v1700 = vrot.slane %v1655, 5
      %v1701 = vrot.slane %v1667, 5
      %v1708 = vrot.slane %v1664, 4
      %v1709 = vrot.slane %v1653, 4
      %v1710 = vrot.slane %v1665, 4
      %v1711 = vrot.slane %v1666, 4
      %v1712 = vrot.slane %v1655, 4
      %v1713 = vrot.slane %v1667, 4
      %v1720 = vrot.slane %v1664, 3
      %v1721 = vrot.slane %v1653, 3
      %v1722 = vrot.slane %v1665, 3
      %v1723 = vrot.slane %v1666, 3
      %v1724 = vrot.slane %v1655, 3
      %v1725 = vrot.slane %v1667, 3
      %v1732 = vrot.slane %v1664, 2
      %v1733 = vrot.slane %v1653, 2
      %v1734 = vrot.slane %v1665, 2
      %v1735 = vrot.slane %v1666, 2
      %v1736 = vrot.slane %v1655, 2
      %v1737 = vrot.slane %v1667, 2
      %v1744 = vrot.slane %v1664, 1
      %v1745 = vrot.slane %v1653, 1
      %v1746 = vrot.slane %v1665, 1
      %v1747 = vrot.slane %v1666, 1
      %v1748 = vrot.slane %v1655, 1
      %v1749 = vrot.slane %v1667, 1
      %v1756 = vsel %vm322, %v1664, %v1672
      %v1757 = vsel %vm322, %v1653, %v1673
      %v1758 = vsel %vm322, %v1665, %v1674
      %v1759 = vsel %vm322, %v1666, %v1675
      %v1760 = vsel %vm322, %v1655, %v1676
      %v1761 = vsel %vm322, %v1667, %v1677
      %v1762 = vsel %vm717, %v1756, %v1684
      %v1763 = vsel %vm717, %v1757, %v1685
      %v1764 = vsel %vm717, %v1758, %v1686
      %v1765 = vsel %vm717, %v1759, %v1687
      %v1766 = vsel %vm717, %v1760, %v1688
      %v1767 = vsel %vm717, %v1761, %v1689
      %v1768 = vsel %vm315, %v1762, %v1684
      %v1769 = vsel %vm315, %v1763, %v1685
      %v1770 = vsel %vm315, %v1764, %v1686
      %v1771 = vsel %vm315, %v1765, %v1687
      %v1772 = vsel %vm315, %v1766, %v1688
      %v1773 = vsel %vm315, %v1767, %v1689
      %v1774 = vsel %vm731, %v1768, %v1696
      %v1775 = vsel %vm731, %v1769, %v1697
      %v1776 = vsel %vm731, %v1770, %v1698
      %v1777 = vsel %vm731, %v1771, %v1699
      %v1778 = vsel %vm731, %v1772, %v1700
      %v1779 = vsel %vm731, %v1773, %v1701
      %v1780 = vsel %vm521, %v1774, %v1708
      %v1781 = vsel %vm521, %v1775, %v1709
      %v1782 = vsel %vm521, %v1776, %v1710
      %v1783 = vsel %vm521, %v1777, %v1711
      %v1784 = vsel %vm521, %v1778, %v1712
      %v1785 = vsel %vm521, %v1779, %v1713
      %v1786 = vsel %vm529, %v1780, %v1708
      %v1787 = vsel %vm529, %v1781, %v1709
      %v1788 = vsel %vm529, %v1782, %v1710
      %v1789 = vsel %vm529, %v1783, %v1711
      %v1790 = vsel %vm529, %v1784, %v1712
      %v1791 = vsel %vm529, %v1785, %v1713
      %v1792 = vsel %vm284, %v1786, %v1720
      %v1793 = vsel %vm284, %v1787, %v1721
      %v1794 = vsel %vm284, %v1788, %v1722
      %v1795 = vsel %vm284, %v1789, %v1723
      %v1796 = vsel %vm284, %v1790, %v1724
      %v1797 = vsel %vm284, %v1791, %v1725
      %v1798 = vsel %vm717, %v1732, %v1744
      %v1799 = vsel %vm717, %v1733, %v1745
      %v1800 = vsel %vm717, %v1734, %v1746
      %v1801 = vsel %vm717, %v1735, %v1747
      %v1802 = vsel %vm717, %v1736, %v1748
      %v1803 = vsel %vm717, %v1737, %v1749
      %v1804 = vsel %vm315, %v1798, %v1664
      %v1805 = vsel %vm315, %v1799, %v1653
      %v1806 = vsel %vm315, %v1800, %v1665
      %v1807 = vsel %vm315, %v1801, %v1666
      %v1808 = vsel %vm315, %v1802, %v1655
      %v1809 = vsel %vm315, %v1803, %v1667
      %v1810 = vmul.f32 %v171, %v1792
      %v1811 = vmul.f32 %v172, %v1793
      %v1812 = vmul.f32 %v173, %v1794
      %v1813 = vmul.f32 %v174, %v1795
      %v1814 = vmul.f32 %v175, %v1796
      %v1815 = vmul.f32 %v176, %v1797
      %v1816 = vmul.f32 %v177, %v1804
      %v1817 = vmul.f32 %v178, %v1805
      %v1818 = vmul.f32 %v179, %v1806
      %v1819 = vmul.f32 %v180, %v1807
      %v1820 = vmul.f32 %v181, %v1808
      %v1821 = vmul.f32 %v182, %v1809
      %1822 = vst [vmem:[%s170] sm:$0xff] %v1810
      %1823 = vst [vmem:[%s170 + $0x8] sm:$0xff] %v1811
      %1824 = vst [vmem:[%s170 + $0x10] sm:$0xff] %v1812
      %1825 = vst [vmem:[%s170 + $0x18] sm:$0xff] %v1813
      %1826 = vst [vmem:[%s170 + $0x20] sm:$0xff] %v1814
      %1827 = vst [vmem:[%s170 + $0x28] sm:$0xff] %v1815
      %1828 = vst [vmem:[%s170 + $0x30] sm:$0xf] %v1816
      %1829 = vst [vmem:[%s170 + $0x38] sm:$0xf] %v1817
      %1830 = vst [vmem:[%s170 + $0x40] sm:$0xf] %v1818
      %1831 = vst [vmem:[%s170 + $0x48] sm:$0xf] %v1819
      %1832 = vst [vmem:[%s170 + $0x50] sm:$0xf] %v1820
      %1833 = vst [vmem:[%s170 + $0x58] sm:$0xf] %v1821
      %p1834 = scmp.lt.s32.totalorder %s14, 1
      %s1835 = scalar_select %p1834, %s14, 1
      %s1836 = smul.addr %s1835, 12
      %s1837 = smul.addr %s1836, 8
      %s1838 = scalar_lea.vmem %s3, %s1837
      // Predicated region
      $region33: #{mra_forward.1} parent=31 // pred_check
        %p1839 = pneg %p100
      $region34: #{mra_forward.1} parent=31 // pred_check_branch
        %1841 = sbr.rel (%p1839) target = $region36
      $region35: #{mra_forward.1} parent=31 // pred_region
        _
      $region36: #{mra_forward.1} parent=31 // pred_fallthru
        _
    $region32: #{mra_forward.1} parent=5 // pred_fallthru
      _
    %p1842 = scmp.le.s32.totalorder 2, %s9
    // Predicated region
    $region37: #{mra_forward.1} parent=5 // pred_check
      %p1843 = pneg %p1842
    $region38: #{mra_forward.1} parent=5 // pred_check_branch
      %1845 = sbr.rel (%p1843) target = $region40
    $region39: #{mra_forward.1} parent=5 // pred_region
      %s1846 = ssub.s32 %s9, 2
      // Predicated region
      $region41: #{mra_forward.1} parent=39 // pred_check
        %p1847 = pneg %p106
      $region42: #{mra_forward.1} parent=39 // pred_check_branch
        %1849 = sbr.rel (%p1847) target = $region44
      $region43: #{mra_forward.1} parent=39 // pred_region
        %p1850 = scmp.lt.s32.totalorder %s15, 1
        %s1851 = scalar_select %p1850, %s15, 1
        %s1852 = smul.addr %s1851, 12
        %s1853 = smul.addr %s1852, 8
        %s1854 = scalar_lea.vmem %s3, %s1853
      $region44: #{mra_forward.1} parent=39 // pred_fallthru
        _
    $region40: #{mra_forward.1} parent=5 // pred_fallthru
      _
  $region6: #{mra_forward.1} parent=0 // loop_footer
    %s13 = sadd.s32 1, %s9
  $region7: #{mra_forward.1} parent=0 // loop_footer_branch
    %8 = sbr.rel target = $region3
  $region8: #{mra_forward.1} parent=0 // loop_exit
    _

</llo_original>
